<compile_context>
chip_gen: v5e
topology: v5e:2x2
jax: 0.10.0
libtpu: 0.0.40
codegen_flags: <defaults>
</compile_context>

<pallas_src>
import jax
import jax.numpy as jnp
from jax.experimental import pallas as pl
from jax.experimental.pallas import tpu as pltpu


# --------------------------------------------------------------------------
# Kernels (activations are [features, N_tile]: batch on the 128-wide lanes)
# --------------------------------------------------------------------------

def dnn2_kernel_collapsed(x_ref, w_in_ref, b_in_ref, w_hid_ref, b_hid_ref,
                          w_out_ref, b_out_ref, out_ref):
    """Default kernel: the degenerate gated recurrence (u == v ⇒ h ≡ u) is
    collapsed to a single hidden layer.  2 tanh passes, 2 MXU matmuls."""
    # ---- Input layer: K=2 contraction as VPU broadcast-FMAs (no MXU) ----
    x0 = x_ref[0:1, :].astype(jnp.float32)           # [1, Nt]
    x1 = x_ref[1:2, :].astype(jnp.float32)           # [1, Nt]
    w0 = w_in_ref[:, 0:1]                            # [H, 1]
    w1 = w_in_ref[:, 1:2]                            # [H, 1]
    pre = w0 * x0 + w1 * x1 + b_in_ref[...]          # [H, Nt]

    # h = u = v = tanh(input(X));  h stays == u through every loop iteration,
    # so the final hidden evaluation is simply tanh(hidden(h)).
    h = jnp.tanh(pre)

    z = jnp.tanh(jnp.dot(w_hid_ref[...], h,
                         preferred_element_type=jnp.float32) + b_hid_ref[...])

    # Output projection -> [O, Nt]: lane-dense store.
    out = (jnp.dot(w_out_ref[...], z, preferred_element_type=jnp.float32)
           + b_out_ref[...])
    out_ref[...] = out.astype(out_ref.dtype)


def dnn2_kernel_exact(x_ref, w_in_ref, b_in_ref, w_hid_ref, b_hid_ref,
                      w_out_ref, b_out_ref, out_ref):
    """Bit-faithful kernel: keeps the full 6x (gate + hidden + tanh) trace of
    the PyTorch module (EUP-bound; ~2.5-3x slower than the collapsed path)."""
    w_hid = w_hid_ref[...]                            # [H, H]
    b_hid = b_hid_ref[...]                            # [H, 1]

    x0 = x_ref[0:1, :].astype(jnp.float32)
    x1 = x_ref[1:2, :].astype(jnp.float32)
    pre = w_in_ref[:, 0:1] * x0 + w_in_ref[:, 1:2] * x1 + b_in_ref[...]

    # x/u/v are the same layer on the same input -> one tanh is bit-exact.
    h = jnp.tanh(pre)
    u = h
    v = h

    z = jnp.tanh(jnp.dot(w_hid, h, preferred_element_type=jnp.float32) + b_hid)
    for _ in range(2, 7):
        h = (1.0 - z) * u + z * v
        z = jnp.tanh(jnp.dot(w_hid, h,
                             preferred_element_type=jnp.float32) + b_hid)

    out = (jnp.dot(w_out_ref[...], z, preferred_element_type=jnp.float32)
           + b_out_ref[...])
    out_ref[...] = out.astype(out_ref.dtype)


# --------------------------------------------------------------------------
# Wrapper
# --------------------------------------------------------------------------

def _round_up(x, m):
    return ((x + m - 1) // m) * m


def _detect_num_tensorcores():
    """Best-effort TensorCores-per-device (2 on v7x, 1 on v5e/v6e)."""
    try:
        dev = jax.devices()[0]
        for attr in ("num_cores", "core_count"):
            n = getattr(dev, attr, None)
            if isinstance(n, int) and n > 0:
                return n
    except Exception:
        pass
    return 1


def dnn2_forward(x, params, *, row_tile=None, num_cores=None,
                 exact_trace=False, max_row_tile=4096):
    """x: [N, 2] float32.  params: dict of PyTorch-layout weights/biases.

    Returns [N, output_vars]."""
    N = x.shape[0]
    H = params["w_hidden"].shape[0]
    O = params["w_output"].shape[0]

    if num_cores is None:
        num_cores = _detect_num_tensorcores()

    if row_tile is None:
        # Size the tile to N: pad only to the next lane multiple, cap the tile
        # at max_row_tile (keeps per-step VMEM small even under v5e's 16 MiB
        # scoped default at H=32), and round the tile COUNT to a multiple of
        # the TensorCore count so the "parallel" grid axis load-balances on
        # multi-TC chips (v7x).
        n_cols = _round_up(max(N, 128), 128)
        n_tiles = max(num_cores, pl.cdiv(n_cols, max_row_tile))
        n_tiles = _round_up(n_tiles, num_cores)
        row_tile = _round_up(pl.cdiv(n_cols, n_tiles), 128)
    assert row_tile % 128 == 0, "row_tile must be a multiple of 128 (lanes)"

    n_tiles = pl.cdiv(N, row_tile)
    n_pad = n_tiles * row_tile

    # Batch-on-lanes: X -> [2, n_pad]; padded columns are zeros, discarded
    # after the kernel.  jnp.pad avoids an extra full-buffer scatter pass.
    x_t = jnp.pad(x.T, ((0, 0), (0, n_pad - N)))

    # Weights in PyTorch layout [out, in]; biases as [out, 1] columns.
    w_in = params["w_input"]               # [H, 2]
    b_in = params["b_input"][:, None]      # [H, 1]
    w_hid = params["w_hidden"]             # [H, H]
    b_hid = params["b_hidden"][:, None]    # [H, 1]
    w_out = params["w_output"]             # [O, H]
    b_out = params["b_output"][:, None]    # [O, 1]

    # Constant (grid-invariant) blocks: index_map always (0, 0) -> resident.
    full = lambda shape: pl.BlockSpec(shape, lambda i: (0, 0))

    kernel = dnn2_kernel_exact if exact_trace else dnn2_kernel_collapsed

    out_t = pl.pallas_call(
        kernel,
        out_shape=jax.ShapeDtypeStruct((O, n_pad), x.dtype),
        grid_spec=pltpu.PrefetchScalarGridSpec(
            num_scalar_prefetch=0,
            grid=(n_tiles,),
            in_specs=[
                pl.BlockSpec((2, row_tile), lambda i: (0, i)),   # X tile
                full((H, 2)),                                    # W_in
                full((H, 1)),                                    # b_in
                full((H, H)),                                    # W_hid
                full((H, 1)),                                    # b_hid
                full((O, H)),                                    # W_out
                full((O, 1)),                                    # b_out
            ],
            out_specs=pl.BlockSpec((O, row_tile), lambda i: (0, i)),
        ),
        compiler_params=pltpu.CompilerParams(
            dimension_semantics=("parallel",)),
    )(x_t, w_in, b_in, w_hid, b_hid, w_out, b_out)

    # Back to [N, O] (slice padded columns away first, then transpose).
    return out_t[:, :N].T


# --------------------------------------------------------------------------
# Deterministic init + pure-JAX reference (faithful to the PyTorch trace)
# --------------------------------------------------------------------------

def init_params(key, num_neurons, output_vars):
    """Mirror nn.Linear's U(-1/sqrt(fan_in), +1/sqrt(fan_in)) init."""
    ks = jax.random.split(key, 6)

    def linear(kw, kb, fan_in, fan_out):
        bound = 1.0 / jnp.sqrt(fan_in)
        w = jax.random.uniform(kw, (fan_out, fan_in), jnp.float32, -bound, bound)
        b = jax.random.uniform(kb, (fan_out,), jnp.float32, -bound, bound)
        return w, b

    w_in, b_in = linear(ks[0], ks[1], 2, num_neurons)
    w_hid, b_hid = linear(ks[2], ks[3], num_neurons, num_neurons)
    w_out, b_out = linear(ks[4], ks[5], num_neurons, output_vars)
    return {
        "w_input": w_in, "b_input": b_in,
        "w_hidden": w_hid, "b_hidden": b_hid,
        "w_output": w_out, "b_output": b_out,
    }


def dnn2_reference(x, params):
    """Pure-JAX reference of DNN2.net (full trace, for correctness checks)."""
    lin = lambda a, w, b: a @ w.T + b
    pre = lin(x, params["w_input"], params["b_input"])
    h = jnp.tanh(pre)
    u = jnp.tanh(pre)
    v = jnp.tanh(pre)
    z = jnp.tanh(lin(h, params["w_hidden"], params["b_hidden"]))
    for _ in range(2, 7):
        h = (1.0 - z) * u + z * v
        z = jnp.tanh(lin(h, params["w_hidden"], params["b_hidden"]))
    return lin(z, params["w_output"], params["b_output"])


if __name__ == "__main__":
    num_neurons = 32
    output_vars = 3
    n_points = 2500          # not a lane multiple: exercises padding (-> 2560)

    key = jax.random.PRNGKey(0)
    k_x, k_p = jax.random.split(key)
    x = jax.random.normal(k_x, (n_points, 2), jnp.float32)
    params = init_params(k_p, num_neurons, output_vars)

    ref = dnn2_reference(x, params)

    # Default (optimized) path: collapsed degenerate recurrence.
    out = jax.block_until_ready(dnn2_forward(x, params))
    assert out.shape == (n_points, output_vars)
    assert jnp.allclose(out, ref, atol=1e-5, rtol=1e-4), (
        float(jnp.max(jnp.abs(out - ref))))

    # Bit-faithful path (full 6-iteration gated recurrence), kept available
    # for strict trace fidelity; verified against the same reference.
    out_exact = jax.block_until_ready(dnn2_forward(x, params, exact_trace=True))
    assert jnp.allclose(out_exact, ref, atol=1e-5, rtol=1e-4), (
        float(jnp.max(jnp.abs(out_exact - ref))))

    print("KERNEL_OK")
</pallas_src>

<mosaic_0001>
module attributes {stable_mosaic.version = 11 : i64} {
  func.func @dnn2_kernel_collapsed(%arg0: i32, %arg1: memref<2x2560xf32, #tpu.memory_space<vmem>>, %arg2: memref<32x2xf32, #tpu.memory_space<vmem>>, %arg3: memref<32x1xf32, #tpu.memory_space<vmem>>, %arg4: memref<32x32xf32, #tpu.memory_space<vmem>>, %arg5: memref<32x1xf32, #tpu.memory_space<vmem>>, %arg6: memref<3x32xf32, #tpu.memory_space<vmem>>, %arg7: memref<3x1xf32, #tpu.memory_space<vmem>>, %arg8: memref<3x2560xf32, #tpu.memory_space<vmem>>) attributes {dimension_semantics = [#tpu.dimension_semantics<parallel>], iteration_bounds = array<i64: 1>, scalar_prefetch = 0 : i64, scratch_operands = 0 : i64, tpu.core_type = #tpu.core_type<tc>, window_params = [{transform_indices = @transform_0, window_bounds = array<i64: 2, 2560>}, {pipeline_mode = #tpu.pipeline_mode<synchronous>, transform_indices = @transform_1, window_bounds = array<i64: 32, 2>}, {pipeline_mode = #tpu.pipeline_mode<synchronous>, transform_indices = @transform_2, window_bounds = array<i64: 32, 1>}, {pipeline_mode = #tpu.pipeline_mode<synchronous>, transform_indices = @transform_3, window_bounds = array<i64: 32, 32>}, {pipeline_mode = #tpu.pipeline_mode<synchronous>, transform_indices = @transform_4, window_bounds = array<i64: 32, 1>}, {pipeline_mode = #tpu.pipeline_mode<synchronous>, transform_indices = @transform_5, window_bounds = array<i64: 3, 32>}, {pipeline_mode = #tpu.pipeline_mode<synchronous>, transform_indices = @transform_6, window_bounds = array<i64: 3, 1>}, {transform_indices = @transform_7, window_bounds = array<i64: 3, 2560>}]} {
    %c0 = arith.constant 0 : index
    %c0_0 = arith.constant 0 : index
    %0 = vector.load %arg1[%c0, %c0_0] : memref<2x2560xf32, #tpu.memory_space<vmem>>, vector<1x2560xf32>
    %c1 = arith.constant 1 : index
    %c0_1 = arith.constant 0 : index
    %1 = vector.load %arg1[%c1, %c0_1] : memref<2x2560xf32, #tpu.memory_space<vmem>>, vector<1x2560xf32>
    %c0_2 = arith.constant 0 : index
    %c0_3 = arith.constant 0 : index
    %2 = vector.load %arg2[%c0_2, %c0_3] : memref<32x2xf32, #tpu.memory_space<vmem>>, vector<32x1xf32>
    %c0_4 = arith.constant 0 : index
    %c1_5 = arith.constant 1 : index
    %3 = vector.load %arg2[%c0_4, %c1_5] : memref<32x2xf32, #tpu.memory_space<vmem>>, vector<32x1xf32>
    %4 = vector.broadcast %2 : vector<32x1xf32> to vector<32x2560xf32>
    %5 = vector.broadcast %0 : vector<1x2560xf32> to vector<32x2560xf32>
    %6 = arith.mulf %4, %5 : vector<32x2560xf32>
    %7 = vector.broadcast %3 : vector<32x1xf32> to vector<32x2560xf32>
    %8 = vector.broadcast %1 : vector<1x2560xf32> to vector<32x2560xf32>
    %9 = arith.mulf %7, %8 : vector<32x2560xf32>
    %10 = arith.addf %6, %9 : vector<32x2560xf32>
    %c0_6 = arith.constant 0 : index
    %c0_7 = arith.constant 0 : index
    %11 = vector.load %arg3[%c0_6, %c0_7] : memref<32x1xf32, #tpu.memory_space<vmem>>, vector<32x1xf32>
    %12 = vector.broadcast %11 : vector<32x1xf32> to vector<32x2560xf32>
    %13 = arith.addf %10, %12 : vector<32x2560xf32>
    %14 = math.tanh %13 : vector<32x2560xf32>
    %c0_8 = arith.constant 0 : index
    %c0_9 = arith.constant 0 : index
    %15 = vector.load %arg4[%c0_8, %c0_9] : memref<32x32xf32, #tpu.memory_space<vmem>>, vector<32x32xf32>
    %cst = arith.constant dense<0.000000e+00> : vector<32x2560xf32>
    %16 = tpu.matmul %15, %14, %cst {dimension_numbers = #tpu.dot_dimension_numbers<[1], [0], [0], [1], [0, 0, 1, 1], [], []>} : vector<32x32xf32>, vector<32x2560xf32>, vector<32x2560xf32> -> vector<32x2560xf32>
    %c0_10 = arith.constant 0 : index
    %c0_11 = arith.constant 0 : index
    %17 = vector.load %arg5[%c0_10, %c0_11] : memref<32x1xf32, #tpu.memory_space<vmem>>, vector<32x1xf32>
    %18 = vector.broadcast %17 : vector<32x1xf32> to vector<32x2560xf32>
    %19 = arith.addf %16, %18 : vector<32x2560xf32>
    %20 = math.tanh %19 : vector<32x2560xf32>
    %c0_12 = arith.constant 0 : index
    %c0_13 = arith.constant 0 : index
    %21 = vector.load %arg6[%c0_12, %c0_13] : memref<3x32xf32, #tpu.memory_space<vmem>>, vector<3x32xf32>
    %cst_14 = arith.constant dense<0.000000e+00> : vector<3x2560xf32>
    %22 = tpu.matmul %21, %20, %cst_14 {dimension_numbers = #tpu.dot_dimension_numbers<[1], [0], [0], [1], [0, 0, 1, 1], [], []>} : vector<3x32xf32>, vector<32x2560xf32>, vector<3x2560xf32> -> vector<3x2560xf32>
    %c0_15 = arith.constant 0 : index
    %c0_16 = arith.constant 0 : index
    %23 = vector.load %arg7[%c0_15, %c0_16] : memref<3x1xf32, #tpu.memory_space<vmem>>, vector<3x1xf32>
    %24 = vector.broadcast %23 : vector<3x1xf32> to vector<3x2560xf32>
    %25 = arith.addf %22, %24 : vector<3x2560xf32>
    %c0_17 = arith.constant 0 : index
    %c0_18 = arith.constant 0 : index
    %26 = vector.load %arg8[%c0_17, %c0_18] : memref<3x2560xf32, #tpu.memory_space<vmem>>, vector<3x2560xf32>
    tpu.vector_store %arg8[%c0_17, %c0_18], %25 {strides = array<i32>} : memref<3x2560xf32, #tpu.memory_space<vmem>>, vector<3x2560xf32>,
    return
  }
  func.func @transform_0(%arg0: i32) -> (i32, i32) {
    %c0_i32 = arith.constant 0 : i32
    %c0_i32_0 = arith.constant 0 : i32
    return %c0_i32, %arg0 : i32, i32
  }
  func.func @transform_1(%arg0: i32) -> (i32, i32) {
    %c0_i32 = arith.constant 0 : i32
    %c0_i32_0 = arith.constant 0 : i32
    %c0_i32_1 = arith.constant 0 : i32
    return %c0_i32, %c0_i32_0 : i32, i32
  }
  func.func @transform_2(%arg0: i32) -> (i32, i32) {
    %c0_i32 = arith.constant 0 : i32
    %c0_i32_0 = arith.constant 0 : i32
    %c0_i32_1 = arith.constant 0 : i32
    return %c0_i32, %c0_i32_0 : i32, i32
  }
  func.func @transform_3(%arg0: i32) -> (i32, i32) {
    %c0_i32 = arith.constant 0 : i32
    %c0_i32_0 = arith.constant 0 : i32
    %c0_i32_1 = arith.constant 0 : i32
    return %c0_i32, %c0_i32_0 : i32, i32
  }
  func.func @transform_4(%arg0: i32) -> (i32, i32) {
    %c0_i32 = arith.constant 0 : i32
    %c0_i32_0 = arith.constant 0 : i32
    %c0_i32_1 = arith.constant 0 : i32
    return %c0_i32, %c0_i32_0 : i32, i32
  }
  func.func @transform_5(%arg0: i32) -> (i32, i32) {
    %c0_i32 = arith.constant 0 : i32
    %c0_i32_0 = arith.constant 0 : i32
    %c0_i32_1 = arith.constant 0 : i32
    return %c0_i32, %c0_i32_0 : i32, i32
  }
  func.func @transform_6(%arg0: i32) -> (i32, i32) {
    %c0_i32 = arith.constant 0 : i32
    %c0_i32_0 = arith.constant 0 : i32
    %c0_i32_1 = arith.constant 0 : i32
    return %c0_i32, %c0_i32_0 : i32, i32
  }
  func.func @transform_7(%arg0: i32) -> (i32, i32) {
    %c0_i32 = arith.constant 0 : i32
    %c0_i32_0 = arith.constant 0 : i32
    return %c0_i32, %arg0 : i32, i32
  }
}

</mosaic_0001>

<llo_original>
// kernel: tpu_custom_call.1
$region0: #{tpu_custom_call.1}
  #allocation0 [shape = 'u32[]', space=smem, size = 0x4, offset = 0x4, fixed_abs, tag = 'smem constant byte address 0x4 - core index']
  #allocation1 [shape = 'u32[72,128]{1,0:T(1,128)}', space=vmem, size = 0x9000, scoped, tag = 'internal scratch']
  %s0 = inlined_call_operand.vmem [shape: f32[2,2560], index: 0, kind: input, shape index: {}]
  %s1 = inlined_call_operand.vmem [shape: f32[32,2], index: 1, kind: input, shape index: {}]
  %s2 = inlined_call_operand.vmem [shape: f32[32,1], index: 2, kind: input, shape index: {}]
  %s3 = inlined_call_operand.vmem [shape: f32[32,32], index: 3, kind: input, shape index: {}]
  %s4 = inlined_call_operand.vmem [shape: f32[32,1], index: 4, kind: input, shape index: {}]
  %s5 = inlined_call_operand.vmem [shape: f32[3,32], index: 5, kind: input, shape index: {}]
  %s6 = inlined_call_operand.vmem [shape: f32[3,1], index: 6, kind: input, shape index: {}]
  %s7 = inlined_call_operand.hbm [shape: f32[3,2560], index: 7, kind: output, shape index: {}]
  %s8 = sld [smem:[#allocation0]]
  $region38: #{tpu_custom_call.1} parent=0
    _
  %s10 = ssub.s32 1, %s8
  %s11 = scalar_select 0, %s10, %s8
  $region1: #{tpu_custom_call.1} parent=0
    #allocation2 [shape = 'u8[40960]{0}', space=vmem, size = 0xa000, scoped, tag = 'output window, operand 0, single buffered']
    #allocation3 [shape = 's32[1]{0}', space=sflag, size = 0x4, scoped, tag = 'scoped memory for tpu_custom_call.1']
    %12 = vsyncpa [#allocation3], 0
    // Predicated region
    $region2: #{tpu_custom_call.1} parent=1 // pred_check
      _
    $region3: #{tpu_custom_call.1} parent=1 // pred_check_branch
      %14 = sbr.rel (0) target = $region5
    $region4: #{tpu_custom_call.1} parent=1 // pred_region
      _
    $region5: #{tpu_custom_call.1} parent=1 // pred_fallthru
      _
    // Predicated region
    $region6: #{tpu_custom_call.1} parent=1 // pred_check
      _
    $region7: #{tpu_custom_call.1} parent=1 // pred_check_branch
      %16 = sbr.rel (0) target = $region9
    $region8: #{tpu_custom_call.1} parent=1 // pred_region
      _
    $region9: #{tpu_custom_call.1} parent=1 // pred_fallthru
      _
    // Predicated region
    $region10: #{tpu_custom_call.1} parent=1 // pred_check
      _
    $region11: #{tpu_custom_call.1} parent=1 // pred_check_branch
      %18 = sbr.rel (0) target = $region13
    $region12: #{tpu_custom_call.1} parent=1 // pred_region
      _
    $region13: #{tpu_custom_call.1} parent=1 // pred_fallthru
      _
    // Predicated region
    $region14: #{tpu_custom_call.1} parent=1 // pred_check
      _
    $region15: #{tpu_custom_call.1} parent=1 // pred_check_branch
      %20 = sbr.rel (0) target = $region17
    $region16: #{tpu_custom_call.1} parent=1 // pred_region
      _
    $region17: #{tpu_custom_call.1} parent=1 // pred_fallthru
      _
    // Predicated region
    $region18: #{tpu_custom_call.1} parent=1 // pred_check
      _
    $region19: #{tpu_custom_call.1} parent=1 // pred_check_branch
      %22 = sbr.rel (0) target = $region21
    $region20: #{tpu_custom_call.1} parent=1 // pred_region
      _
    $region21: #{tpu_custom_call.1} parent=1 // pred_fallthru
      _
    // Predicated region
    $region22: #{tpu_custom_call.1} parent=1 // pred_check
      _
    $region23: #{tpu_custom_call.1} parent=1 // pred_check_branch
      %24 = sbr.rel (0) target = $region25
    $region24: #{tpu_custom_call.1} parent=1 // pred_region
      _
    $region25: #{tpu_custom_call.1} parent=1 // pred_fallthru
      _
    // Predicated region
    $region26: #{tpu_custom_call.1} parent=1 // pred_check
      _
    $region27: #{tpu_custom_call.1} parent=1 // pred_check_branch
      %26 = sbr.rel (0) target = $region29
    $region28: #{tpu_custom_call.1} parent=1 // pred_region
      _
    $region29: #{tpu_custom_call.1} parent=1 // pred_fallthru
      _
    %v27 = vld [vmem:[%s0] ss:$2 sm:$0xff]
    %s28 = scalar_lea.vmem %s0, 16
    %v29 = vld [vmem:[%s28] ss:$2 sm:$0xff]
    %s30 = scalar_lea.vmem %s0, 32
    %v31 = vld [vmem:[%s30] ss:$2 sm:$0xf]
    %s32 = scalar_lea.vmem %s0, 1
    %v33 = vld [vmem:[%s32] ss:$2 sm:$0xff]
    %s34 = scalar_lea.vmem %s0, 17
    %v35 = vld [vmem:[%s34] ss:$2 sm:$0xff]
    %s36 = scalar_lea.vmem %s0, 33
    %v37 = vld [vmem:[%s36] ss:$2 sm:$0xf]
    %v38 = vld [vmem:[%s1] sm:$0xff]
    %v39 = vld [vmem:[%s1 + $0x8] sm:$0xff]
    %v40 = vld [vmem:[%s1 + $0x10] sm:$0xff]
    %v41 = vld [vmem:[%s1 + $0x18] sm:$0xff]
    %43 = vset.pattern.permute.xlu0 0
    %44 = vperm.xlu0 %43, %v38
    %v45 = vpop.permute.xlu0 %44
    %48 = vset.pattern.permute.xlu0 0
    %49 = vperm.xlu0 %48, %v39
    %v50 = vpop.permute.xlu0 %49
    %53 = vset.pattern.permute.xlu0 0
    %54 = vperm.xlu0 %53, %v40
    %v55 = vpop.permute.xlu0 %54
    %58 = vset.pattern.permute.xlu0 0
    %59 = vperm.xlu0 %58, %v41
    %v60 = vpop.permute.xlu0 %59
    %v65 = vperm.slane %v27, 0
    %v66 = vperm.slane %v27, 1
    %v67 = vperm.slane %v27, 2
    %v68 = vperm.slane %v27, 3
    %v69 = vperm.slane %v27, 4
    %v70 = vperm.slane %v27, 5
    %v71 = vperm.slane %v27, 6
    %v72 = vperm.slane %v27, 7
    %v73 = vperm.slane %v29, 0
    %v74 = vperm.slane %v29, 1
    %v75 = vperm.slane %v29, 2
    %v76 = vperm.slane %v29, 3
    %v77 = vperm.slane %v29, 4
    %v78 = vperm.slane %v29, 5
    %v79 = vperm.slane %v29, 6
    %v80 = vperm.slane %v29, 7
    %v81 = vperm.slane %v31, 0
    %v82 = vperm.slane %v31, 1
    %v83 = vperm.slane %v31, 2
    %v84 = vperm.slane %v31, 3
    %v105 = vmul.f32 %v45, %v65
    %v106 = vmul.f32 %v45, %v66
    %v107 = vmul.f32 %v45, %v67
    %v108 = vmul.f32 %v45, %v68
    %v109 = vmul.f32 %v45, %v69
    %v110 = vmul.f32 %v45, %v70
    %v111 = vmul.f32 %v45, %v71
    %v112 = vmul.f32 %v45, %v72
    %v113 = vmul.f32 %v45, %v73
    %v114 = vmul.f32 %v45, %v74
    %v115 = vmul.f32 %v45, %v75
    %v116 = vmul.f32 %v45, %v76
    %v117 = vmul.f32 %v45, %v77
    %v118 = vmul.f32 %v45, %v78
    %v119 = vmul.f32 %v45, %v79
    %v120 = vmul.f32 %v45, %v80
    %v121 = vmul.f32 %v45, %v81
    %v122 = vmul.f32 %v45, %v82
    %v123 = vmul.f32 %v45, %v83
    %v124 = vmul.f32 %v45, %v84
    %v125 = vmul.f32 %v50, %v65
    %v126 = vmul.f32 %v50, %v66
    %v127 = vmul.f32 %v50, %v67
    %v128 = vmul.f32 %v50, %v68
    %v129 = vmul.f32 %v50, %v69
    %v130 = vmul.f32 %v50, %v70
    %v131 = vmul.f32 %v50, %v71
    %v132 = vmul.f32 %v50, %v72
    %v133 = vmul.f32 %v50, %v73
    %v134 = vmul.f32 %v50, %v74
    %v135 = vmul.f32 %v50, %v75
    %v136 = vmul.f32 %v50, %v76
    %v137 = vmul.f32 %v50, %v77
    %v138 = vmul.f32 %v50, %v78
    %v139 = vmul.f32 %v50, %v79
    %v140 = vmul.f32 %v50, %v80
    %v141 = vmul.f32 %v50, %v81
    %v142 = vmul.f32 %v50, %v82
    %v143 = vmul.f32 %v50, %v83
    %v144 = vmul.f32 %v50, %v84
    %v145 = vmul.f32 %v55, %v65
    %v146 = vmul.f32 %v55, %v66
    %v147 = vmul.f32 %v55, %v67
    %v148 = vmul.f32 %v55, %v68
    %v149 = vmul.f32 %v55, %v69
    %v150 = vmul.f32 %v55, %v70
    %v151 = vmul.f32 %v55, %v71
    %v152 = vmul.f32 %v55, %v72
    %v153 = vmul.f32 %v55, %v73
    %v154 = vmul.f32 %v55, %v74
    %v155 = vmul.f32 %v55, %v75
    %v156 = vmul.f32 %v55, %v76
    %v157 = vmul.f32 %v55, %v77
    %v158 = vmul.f32 %v55, %v78
    %v159 = vmul.f32 %v55, %v79
    %v160 = vmul.f32 %v55, %v80
    %v161 = vmul.f32 %v55, %v81
    %v162 = vmul.f32 %v55, %v82
    %v163 = vmul.f32 %v55, %v83
    %v164 = vmul.f32 %v55, %v84
    %v165 = vmul.f32 %v60, %v65
    %v166 = vmul.f32 %v60, %v66
    %v167 = vmul.f32 %v60, %v67
    %v168 = vmul.f32 %v60, %v68
    %v169 = vmul.f32 %v60, %v69
    %v170 = vmul.f32 %v60, %v70
    %v171 = vmul.f32 %v60, %v71
    %v172 = vmul.f32 %v60, %v72
    %v173 = vmul.f32 %v60, %v73
    %v174 = vmul.f32 %v60, %v74
    %v175 = vmul.f32 %v60, %v75
    %v176 = vmul.f32 %v60, %v76
    %v177 = vmul.f32 %v60, %v77
    %v178 = vmul.f32 %v60, %v78
    %v179 = vmul.f32 %v60, %v79
    %v180 = vmul.f32 %v60, %v80
    %v181 = vmul.f32 %v60, %v81
    %v182 = vmul.f32 %v60, %v82
    %v183 = vmul.f32 %v60, %v83
    %v184 = vmul.f32 %v60, %v84
    %185 = vset.pattern.permute.xlu0 1
    %186 = vperm.xlu0 %185, %v38
    %v187 = vpop.permute.xlu0 %186
    %189 = vset.pattern.permute.xlu0 1
    %190 = vperm.xlu0 %189, %v39
    %v191 = vpop.permute.xlu0 %190
    %193 = vset.pattern.permute.xlu0 1
    %194 = vperm.xlu0 %193, %v40
    %v195 = vpop.permute.xlu0 %194
    %197 = vset.pattern.permute.xlu0 1
    %198 = vperm.xlu0 %197, %v41
    %v199 = vpop.permute.xlu0 %198
    %v204 = vperm.slane %v33, 0
    %v205 = vperm.slane %v33, 1
    %v206 = vperm.slane %v33, 2
    %v207 = vperm.slane %v33, 3
    %v208 = vperm.slane %v33, 4
    %v209 = vperm.slane %v33, 5
    %v210 = vperm.slane %v33, 6
    %v211 = vperm.slane %v33, 7
    %v212 = vperm.slane %v35, 0
    %v213 = vperm.slane %v35, 1
    %v214 = vperm.slane %v35, 2
    %v215 = vperm.slane %v35, 3
    %v216 = vperm.slane %v35, 4
    %v217 = vperm.slane %v35, 5
    %v218 = vperm.slane %v35, 6
    %v219 = vperm.slane %v35, 7
    %v220 = vperm.slane %v37, 0
    %v221 = vperm.slane %v37, 1
    %v222 = vperm.slane %v37, 2
    %v223 = vperm.slane %v37, 3
    %v244 = vmul.f32 %v187, %v204
    %v245 = vmul.f32 %v187, %v205
    %v246 = vmul.f32 %v187, %v206
    %v247 = vmul.f32 %v187, %v207
    %v248 = vmul.f32 %v187, %v208
    %v249 = vmul.f32 %v187, %v209
    %v250 = vmul.f32 %v187, %v210
    %v251 = vmul.f32 %v187, %v211
    %v252 = vmul.f32 %v187, %v212
    %v253 = vmul.f32 %v187, %v213
    %v254 = vmul.f32 %v187, %v214
    %v255 = vmul.f32 %v187, %v215
    %v256 = vmul.f32 %v187, %v216
    %v257 = vmul.f32 %v187, %v217
    %v258 = vmul.f32 %v187, %v218
    %v259 = vmul.f32 %v187, %v219
    %v260 = vmul.f32 %v187, %v220
    %v261 = vmul.f32 %v187, %v221
    %v262 = vmul.f32 %v187, %v222
    %v263 = vmul.f32 %v187, %v223
    %v264 = vmul.f32 %v191, %v204
    %v265 = vmul.f32 %v191, %v205
    %v266 = vmul.f32 %v191, %v206
    %v267 = vmul.f32 %v191, %v207
    %v268 = vmul.f32 %v191, %v208
    %v269 = vmul.f32 %v191, %v209
    %v270 = vmul.f32 %v191, %v210
    %v271 = vmul.f32 %v191, %v211
    %v272 = vmul.f32 %v191, %v212
    %v273 = vmul.f32 %v191, %v213
    %v274 = vmul.f32 %v191, %v214
    %v275 = vmul.f32 %v191, %v215
    %v276 = vmul.f32 %v191, %v216
    %v277 = vmul.f32 %v191, %v217
    %v278 = vmul.f32 %v191, %v218
    %v279 = vmul.f32 %v191, %v219
    %v280 = vmul.f32 %v191, %v220
    %v281 = vmul.f32 %v191, %v221
    %v282 = vmul.f32 %v191, %v222
    %v283 = vmul.f32 %v191, %v223
    %v284 = vmul.f32 %v195, %v204
    %v285 = vmul.f32 %v195, %v205
    %v286 = vmul.f32 %v195, %v206
    %v287 = vmul.f32 %v195, %v207
    %v288 = vmul.f32 %v195, %v208
    %v289 = vmul.f32 %v195, %v209
    %v290 = vmul.f32 %v195, %v210
    %v291 = vmul.f32 %v195, %v211
    %v292 = vmul.f32 %v195, %v212
    %v293 = vmul.f32 %v195, %v213
    %v294 = vmul.f32 %v195, %v214
    %v295 = vmul.f32 %v195, %v215
    %v296 = vmul.f32 %v195, %v216
    %v297 = vmul.f32 %v195, %v217
    %v298 = vmul.f32 %v195, %v218
    %v299 = vmul.f32 %v195, %v219
    %v300 = vmul.f32 %v195, %v220
    %v301 = vmul.f32 %v195, %v221
    %v302 = vmul.f32 %v195, %v222
    %v303 = vmul.f32 %v195, %v223
    %v304 = vmul.f32 %v199, %v204
    %v305 = vmul.f32 %v199, %v205
    %v306 = vmul.f32 %v199, %v206
    %v307 = vmul.f32 %v199, %v207
    %v308 = vmul.f32 %v199, %v208
    %v309 = vmul.f32 %v199, %v209
    %v310 = vmul.f32 %v199, %v210
    %v311 = vmul.f32 %v199, %v211
    %v312 = vmul.f32 %v199, %v212
    %v313 = vmul.f32 %v199, %v213
    %v314 = vmul.f32 %v199, %v214
    %v315 = vmul.f32 %v199, %v215
    %v316 = vmul.f32 %v199, %v216
    %v317 = vmul.f32 %v199, %v217
    %v318 = vmul.f32 %v199, %v218
    %v319 = vmul.f32 %v199, %v219
    %v320 = vmul.f32 %v199, %v220
    %v321 = vmul.f32 %v199, %v221
    %v322 = vmul.f32 %v199, %v222
    %v323 = vmul.f32 %v199, %v223
    %v324 = vadd.f32 %v105, %v244
    %v325 = vadd.f32 %v106, %v245
    %v326 = vadd.f32 %v107, %v246
    %v327 = vadd.f32 %v108, %v247
    %v328 = vadd.f32 %v109, %v248
    %v329 = vadd.f32 %v110, %v249
    %v330 = vadd.f32 %v111, %v250
    %v331 = vadd.f32 %v112, %v251
    %v332 = vadd.f32 %v113, %v252
    %v333 = vadd.f32 %v114, %v253
    %v334 = vadd.f32 %v115, %v254
    %v335 = vadd.f32 %v116, %v255
    %v336 = vadd.f32 %v117, %v256
    %v337 = vadd.f32 %v118, %v257
    %v338 = vadd.f32 %v119, %v258
    %v339 = vadd.f32 %v120, %v259
    %v340 = vadd.f32 %v121, %v260
    %v341 = vadd.f32 %v122, %v261
    %v342 = vadd.f32 %v123, %v262
    %v343 = vadd.f32 %v124, %v263
    %v344 = vadd.f32 %v125, %v264
    %v345 = vadd.f32 %v126, %v265
    %v346 = vadd.f32 %v127, %v266
    %v347 = vadd.f32 %v128, %v267
    %v348 = vadd.f32 %v129, %v268
    %v349 = vadd.f32 %v130, %v269
    %v350 = vadd.f32 %v131, %v270
    %v351 = vadd.f32 %v132, %v271
    %v352 = vadd.f32 %v133, %v272
    %v353 = vadd.f32 %v134, %v273
    %v354 = vadd.f32 %v135, %v274
    %v355 = vadd.f32 %v136, %v275
    %v356 = vadd.f32 %v137, %v276
    %v357 = vadd.f32 %v138, %v277
    %v358 = vadd.f32 %v139, %v278
    %v359 = vadd.f32 %v140, %v279
    %v360 = vadd.f32 %v141, %v280
    %v361 = vadd.f32 %v142, %v281
    %v362 = vadd.f32 %v143, %v282
    %v363 = vadd.f32 %v144, %v283
    %v364 = vadd.f32 %v145, %v284
    %v365 = vadd.f32 %v146, %v285
    %v366 = vadd.f32 %v147, %v286
    %v367 = vadd.f32 %v148, %v287
    %v368 = vadd.f32 %v149, %v288
    %v369 = vadd.f32 %v150, %v289
    %v370 = vadd.f32 %v151, %v290
    %v371 = vadd.f32 %v152, %v291
    %v372 = vadd.f32 %v153, %v292
    %v373 = vadd.f32 %v154, %v293
    %v374 = vadd.f32 %v155, %v294
    %v375 = vadd.f32 %v156, %v295
    %v376 = vadd.f32 %v157, %v296
    %v377 = vadd.f32 %v158, %v297
    %v378 = vadd.f32 %v159, %v298
    %v379 = vadd.f32 %v160, %v299
    %v380 = vadd.f32 %v161, %v300
    %v381 = vadd.f32 %v162, %v301
    %v382 = vadd.f32 %v163, %v302
    %v383 = vadd.f32 %v164, %v303
    %v384 = vadd.f32 %v165, %v304
    %v385 = vadd.f32 %v166, %v305
    %v386 = vadd.f32 %v167, %v306
    %v387 = vadd.f32 %v168, %v307
    %v388 = vadd.f32 %v169, %v308
    %v389 = vadd.f32 %v170, %v309
    %v390 = vadd.f32 %v171, %v310
    %v391 = vadd.f32 %v172, %v311
    %v392 = vadd.f32 %v173, %v312
    %v393 = vadd.f32 %v174, %v313
    %v394 = vadd.f32 %v175, %v314
    %v395 = vadd.f32 %v176, %v315
    %v396 = vadd.f32 %v177, %v316
    %v397 = vadd.f32 %v178, %v317
    %v398 = vadd.f32 %v179, %v318
    %v399 = vadd.f32 %v180, %v319
    %v400 = vadd.f32 %v181, %v320
    %v401 = vadd.f32 %v182, %v321
    %v402 = vadd.f32 %v183, %v322
    %v403 = vadd.f32 %v184, %v323
    %v404 = vld [vmem:[%s2] sm:$0xff]
    %v405 = vld [vmem:[%s2 + $0x8] sm:$0xff]
    %v406 = vld [vmem:[%s2 + $0x10] sm:$0xff]
    %v407 = vld [vmem:[%s2 + $0x18] sm:$0xff]
    %409 = vset.pattern.permute.xlu0 0
    %410 = vperm.xlu0 %409, %v404
    %v411 = vpop.permute.xlu0 %410
    %414 = vset.pattern.permute.xlu0 0
    %415 = vperm.xlu0 %414, %v405
    %v416 = vpop.permute.xlu0 %415
    %419 = vset.pattern.permute.xlu0 0
    %420 = vperm.xlu0 %419, %v406
    %v421 = vpop.permute.xlu0 %420
    %424 = vset.pattern.permute.xlu0 0
    %425 = vperm.xlu0 %424, %v407
    %v426 = vpop.permute.xlu0 %425
    %v428 = vadd.f32 %v324, %v411
    %v429 = vadd.f32 %v325, %v411
    %v430 = vadd.f32 %v326, %v411
    %v431 = vadd.f32 %v327, %v411
    %v432 = vadd.f32 %v328, %v411
    %v433 = vadd.f32 %v329, %v411
    %v434 = vadd.f32 %v330, %v411
    %v435 = vadd.f32 %v331, %v411
    %v436 = vadd.f32 %v332, %v411
    %v437 = vadd.f32 %v333, %v411
    %v438 = vadd.f32 %v334, %v411
    %v439 = vadd.f32 %v335, %v411
    %v440 = vadd.f32 %v336, %v411
    %v441 = vadd.f32 %v337, %v411
    %v442 = vadd.f32 %v338, %v411
    %v443 = vadd.f32 %v339, %v411
    %v444 = vadd.f32 %v340, %v411
    %v445 = vadd.f32 %v341, %v411
    %v446 = vadd.f32 %v342, %v411
    %v447 = vadd.f32 %v343, %v411
    %v448 = vadd.f32 %v344, %v416
    %v449 = vadd.f32 %v345, %v416
    %v450 = vadd.f32 %v346, %v416
    %v451 = vadd.f32 %v347, %v416
    %v452 = vadd.f32 %v348, %v416
    %v453 = vadd.f32 %v349, %v416
    %v454 = vadd.f32 %v350, %v416
    %v455 = vadd.f32 %v351, %v416
    %v456 = vadd.f32 %v352, %v416
    %v457 = vadd.f32 %v353, %v416
    %v458 = vadd.f32 %v354, %v416
    %v459 = vadd.f32 %v355, %v416
    %v460 = vadd.f32 %v356, %v416
    %v461 = vadd.f32 %v357, %v416
    %v462 = vadd.f32 %v358, %v416
    %v463 = vadd.f32 %v359, %v416
    %v464 = vadd.f32 %v360, %v416
    %v465 = vadd.f32 %v361, %v416
    %v466 = vadd.f32 %v362, %v416
    %v467 = vadd.f32 %v363, %v416
    %v468 = vadd.f32 %v364, %v421
    %v469 = vadd.f32 %v365, %v421
    %v470 = vadd.f32 %v366, %v421
    %v471 = vadd.f32 %v367, %v421
    %v472 = vadd.f32 %v368, %v421
    %v473 = vadd.f32 %v369, %v421
    %v474 = vadd.f32 %v370, %v421
    %v475 = vadd.f32 %v371, %v421
    %v476 = vadd.f32 %v372, %v421
    %v477 = vadd.f32 %v373, %v421
    %v478 = vadd.f32 %v374, %v421
    %v479 = vadd.f32 %v375, %v421
    %v480 = vadd.f32 %v376, %v421
    %v481 = vadd.f32 %v377, %v421
    %v482 = vadd.f32 %v378, %v421
    %v483 = vadd.f32 %v379, %v421
    %v484 = vadd.f32 %v380, %v421
    %v485 = vadd.f32 %v381, %v421
    %v486 = vadd.f32 %v382, %v421
    %v487 = vadd.f32 %v383, %v421
    %v488 = vadd.f32 %v384, %v426
    %v489 = vadd.f32 %v385, %v426
    %v490 = vadd.f32 %v386, %v426
    %v491 = vadd.f32 %v387, %v426
    %v492 = vadd.f32 %v388, %v426
    %v493 = vadd.f32 %v389, %v426
    %v494 = vadd.f32 %v390, %v426
    %v495 = vadd.f32 %v391, %v426
    %v496 = vadd.f32 %v392, %v426
    %v497 = vadd.f32 %v393, %v426
    %v498 = vadd.f32 %v394, %v426
    %v499 = vadd.f32 %v395, %v426
    %v500 = vadd.f32 %v396, %v426
    %v501 = vadd.f32 %v397, %v426
    %v502 = vadd.f32 %v398, %v426
    %v503 = vadd.f32 %v399, %v426
    %v504 = vadd.f32 %v400, %v426
    %v505 = vadd.f32 %v401, %v426
    %v506 = vadd.f32 %v402, %v426
    %v507 = vadd.f32 %v403, %v426
    %v508 = vtanh.pop %v428
    %v509 = vtanh.pop %v429
    %v510 = vtanh.pop %v430
    %v511 = vtanh.pop %v431
    %v512 = vtanh.pop %v432
    %v513 = vtanh.pop %v433
    %v514 = vtanh.pop %v434
    %v515 = vtanh.pop %v435
    %v516 = vtanh.pop %v436
    %v517 = vtanh.pop %v437
    %v518 = vtanh.pop %v438
    %v519 = vtanh.pop %v439
    %v520 = vtanh.pop %v440
    %v521 = vtanh.pop %v441
    %v522 = vtanh.pop %v442
    %v523 = vtanh.pop %v443
    %v524 = vtanh.pop %v444
    %v525 = vtanh.pop %v445
    %v526 = vtanh.pop %v446
    %v527 = vtanh.pop %v447
    %v528 = vtanh.pop %v448
    %v529 = vtanh.pop %v449
    %v530 = vtanh.pop %v450
    %v531 = vtanh.pop %v451
    %v532 = vtanh.pop %v452
    %v533 = vtanh.pop %v453
    %v534 = vtanh.pop %v454
    %v535 = vtanh.pop %v455
    %v536 = vtanh.pop %v456
    %v537 = vtanh.pop %v457
    %v538 = vtanh.pop %v458
    %v539 = vtanh.pop %v459
    %v540 = vtanh.pop %v460
    %v541 = vtanh.pop %v461
    %v542 = vtanh.pop %v462
    %v543 = vtanh.pop %v463
    %v544 = vtanh.pop %v464
    %v545 = vtanh.pop %v465
    %v546 = vtanh.pop %v466
    %v547 = vtanh.pop %v467
    %v548 = vtanh.pop %v468
    %v549 = vtanh.pop %v469
    %v550 = vtanh.pop %v470
    %v551 = vtanh.pop %v471
    %v552 = vtanh.pop %v472
    %v553 = vtanh.pop %v473
    %v554 = vtanh.pop %v474
    %v555 = vtanh.pop %v475
    %v556 = vtanh.pop %v476
    %v557 = vtanh.pop %v477
    %v558 = vtanh.pop %v478
    %v559 = vtanh.pop %v479
    %v560 = vtanh.pop %v480
    %v561 = vtanh.pop %v481
    %v562 = vtanh.pop %v482
    %v563 = vtanh.pop %v483
    %v564 = vtanh.pop %v484
    %v565 = vtanh.pop %v485
    %v566 = vtanh.pop %v486
    %v567 = vtanh.pop %v487
    %v568 = vtanh.pop %v488
    %v569 = vtanh.pop %v489
    %v570 = vtanh.pop %v490
    %v571 = vtanh.pop %v491
    %v572 = vtanh.pop %v492
    %v573 = vtanh.pop %v493
    %v574 = vtanh.pop %v494
    %v575 = vtanh.pop %v495
    %v576 = vtanh.pop %v496
    %v577 = vtanh.pop %v497
    %v578 = vtanh.pop %v498
    %v579 = vtanh.pop %v499
    %v580 = vtanh.pop %v500
    %v581 = vtanh.pop %v501
    %v582 = vtanh.pop %v502
    %v583 = vtanh.pop %v503
    %v584 = vtanh.pop %v504
    %v585 = vtanh.pop %v505
    %v586 = vtanh.pop %v506
    %v587 = vtanh.pop %v507
    %v588 = vld [vmem:[%s3] sm:$0xff]
    %v589 = vld [vmem:[%s3 + $0x8] sm:$0xff]
    %v590 = vld [vmem:[%s3 + $0x10] sm:$0xff]
    %v591 = vld [vmem:[%s3 + $0x18] sm:$0xff]
    %v592 = vld [vmem:[%s4] sm:$0xff]
    %v593 = vld [vmem:[%s4 + $0x8] sm:$0xff]
    %v594 = vld [vmem:[%s4 + $0x10] sm:$0xff]
    %v595 = vld [vmem:[%s4 + $0x18] sm:$0xff]
    %597 = vset.pattern.permute.xlu0 0
    %598 = vperm.xlu0 %597, %v592
    %v599 = vpop.permute.xlu0 %598
    %602 = vset.pattern.permute.xlu0 0
    %603 = vperm.xlu0 %602, %v593
    %v604 = vpop.permute.xlu0 %603
    %607 = vset.pattern.permute.xlu0 0
    %608 = vperm.xlu0 %607, %v594
    %v609 = vpop.permute.xlu0 %608
    %612 = vset.pattern.permute.xlu0 0
    %613 = vperm.xlu0 %612, %v595
    %v614 = vpop.permute.xlu0 %613
    %vm616 = vcmask 261120
    %v618 = vsel %vm616, %v588, 0
    %v621 = vsel %vm616, %v589, 0
    %v624 = vsel %vm616, %v590, 0
    %v627 = vsel %vm616, %v591, 0
    %629 = vmatpush.msra.mxu0 0.0
    %630 = vmatpush.msra.mxu0 0.0
    %631 = vmatpush.msra.mxu0 0.0
    %632 = vmatpush.msra.mxu0 0.0
    %633 = vmatpush.msra.mxu0 0.0
    %634 = vmatpush.msra.mxu0 0.0
    %635 = vmatpush.msra.mxu0 0.0
    %636 = vmatpush.msra.mxu0 0.0
    %637 = vmatpush.msra.mxu0 0.0
    %638 = vmatpush.msra.mxu0 0.0
    %639 = vmatpush.msra.mxu0 0.0
    %640 = vmatpush.msra.mxu0 0.0
    %641 = vmatpush.msra.mxu0 %v568
    %642 = vmatpush.msra.mxu0 %v548
    %643 = vmatpush.msra.mxu0 %v528
    %644 = vmatpush.msra.mxu0 %v508
    %645 = vmatmul.f32.gmra.mxu0 %v618
    %v646 = vpop.f32.mrf.mxu0
    %v647 = vadd.f32 %v599, %v646
    %648 = vmatmul.f32.gmra.mxu0 %v621
    %v649 = vpop.f32.mrf.mxu0
    %v650 = vadd.f32 %v604, %v649
    %651 = vmatmul.f32.gmra.mxu0 %v624
    %v652 = vpop.f32.mrf.mxu0
    %v653 = vadd.f32 %v609, %v652
    %654 = vmatmul.f32.gmra.mxu0 %v627
    %v655 = vpop.f32.mrf.mxu0
    %v656 = vadd.f32 %v614, %v655
    %657 = vdwg.mxu0
    %658 = vmatpush.msra.mxu0 0.0
    %659 = vmatpush.msra.mxu0 0.0
    %660 = vmatpush.msra.mxu0 0.0
    %661 = vmatpush.msra.mxu0 0.0
    %662 = vmatpush.msra.mxu0 0.0
    %663 = vmatpush.msra.mxu0 0.0
    %664 = vmatpush.msra.mxu0 0.0
    %665 = vmatpush.msra.mxu0 0.0
    %666 = vmatpush.msra.mxu0 0.0
    %667 = vmatpush.msra.mxu0 0.0
    %668 = vmatpush.msra.mxu0 0.0
    %669 = vmatpush.msra.mxu0 0.0
    %670 = vmatpush.msra.mxu0 %v569
    %671 = vmatpush.msra.mxu0 %v549
    %672 = vmatpush.msra.mxu0 %v529
    %673 = vmatpush.msra.mxu0 %v509
    %674 = vmatmul.f32.gmra.mxu0 %v618
    %v675 = vpop.f32.mrf.mxu0
    %v676 = vadd.f32 %v599, %v675
    %677 = vmatmul.f32.gmra.mxu0 %v621
    %v678 = vpop.f32.mrf.mxu0
    %v679 = vadd.f32 %v604, %v678
    %680 = vmatmul.f32.gmra.mxu0 %v624
    %v681 = vpop.f32.mrf.mxu0
    %v682 = vadd.f32 %v609, %v681
    %683 = vmatmul.f32.gmra.mxu0 %v627
    %v684 = vpop.f32.mrf.mxu0
    %v685 = vadd.f32 %v614, %v684
    %686 = vdwg.mxu0
    %687 = vmatpush.msra.mxu0 0.0
    %688 = vmatpush.msra.mxu0 0.0
    %689 = vmatpush.msra.mxu0 0.0
    %690 = vmatpush.msra.mxu0 0.0
    %691 = vmatpush.msra.mxu0 0.0
    %692 = vmatpush.msra.mxu0 0.0
    %693 = vmatpush.msra.mxu0 0.0
    %694 = vmatpush.msra.mxu0 0.0
    %695 = vmatpush.msra.mxu0 0.0
    %696 = vmatpush.msra.mxu0 0.0
    %697 = vmatpush.msra.mxu0 0.0
    %698 = vmatpush.msra.mxu0 0.0
    %699 = vmatpush.msra.mxu0 %v570
    %700 = vmatpush.msra.mxu0 %v550
    %701 = vmatpush.msra.mxu0 %v530
    %702 = vmatpush.msra.mxu0 %v510
    %703 = vmatmul.f32.gmra.mxu0 %v618
    %v704 = vpop.f32.mrf.mxu0
    %v705 = vadd.f32 %v599, %v704
    %706 = vmatmul.f32.gmra.mxu0 %v621
    %v707 = vpop.f32.mrf.mxu0
    %v708 = vadd.f32 %v604, %v707
    %709 = vmatmul.f32.gmra.mxu0 %v624
    %v710 = vpop.f32.mrf.mxu0
    %v711 = vadd.f32 %v609, %v710
    %712 = vmatmul.f32.gmra.mxu0 %v627
    %v713 = vpop.f32.mrf.mxu0
    %v714 = vadd.f32 %v614, %v713
    %715 = vdwg.mxu0
    %716 = vmatpush.msra.mxu0 0.0
    %717 = vmatpush.msra.mxu0 0.0
    %718 = vmatpush.msra.mxu0 0.0
    %719 = vmatpush.msra.mxu0 0.0
    %720 = vmatpush.msra.mxu0 0.0
    %721 = vmatpush.msra.mxu0 0.0
    %722 = vmatpush.msra.mxu0 0.0
    %723 = vmatpush.msra.mxu0 0.0
    %724 = vmatpush.msra.mxu0 0.0
    %725 = vmatpush.msra.mxu0 0.0
    %726 = vmatpush.msra.mxu0 0.0
    %727 = vmatpush.msra.mxu0 0.0
    %728 = vmatpush.msra.mxu0 %v571
    %729 = vmatpush.msra.mxu0 %v551
    %730 = vmatpush.msra.mxu0 %v531
    %731 = vmatpush.msra.mxu0 %v511
    %732 = vmatmul.f32.gmra.mxu0 %v618
    %v733 = vpop.f32.mrf.mxu0
    %v734 = vadd.f32 %v599, %v733
    %735 = vmatmul.f32.gmra.mxu0 %v621
    %v736 = vpop.f32.mrf.mxu0
    %v737 = vadd.f32 %v604, %v736
    %738 = vmatmul.f32.gmra.mxu0 %v624
    %v739 = vpop.f32.mrf.mxu0
    %v740 = vadd.f32 %v609, %v739
    %741 = vmatmul.f32.gmra.mxu0 %v627
    %v742 = vpop.f32.mrf.mxu0
    %v743 = vadd.f32 %v614, %v742
    %744 = vdwg.mxu0
    %745 = vmatpush.msra.mxu0 0.0
    %746 = vmatpush.msra.mxu0 0.0
    %747 = vmatpush.msra.mxu0 0.0
    %748 = vmatpush.msra.mxu0 0.0
    %749 = vmatpush.msra.mxu0 0.0
    %750 = vmatpush.msra.mxu0 0.0
    %751 = vmatpush.msra.mxu0 0.0
    %752 = vmatpush.msra.mxu0 0.0
    %753 = vmatpush.msra.mxu0 0.0
    %754 = vmatpush.msra.mxu0 0.0
    %755 = vmatpush.msra.mxu0 0.0
    %756 = vmatpush.msra.mxu0 0.0
    %757 = vmatpush.msra.mxu0 %v572
    %758 = vmatpush.msra.mxu0 %v552
    %759 = vmatpush.msra.mxu0 %v532
    %760 = vmatpush.msra.mxu0 %v512
    %761 = vmatmul.f32.gmra.mxu0 %v618
    %v762 = vpop.f32.mrf.mxu0
    %v763 = vadd.f32 %v599, %v762
    %764 = vmatmul.f32.gmra.mxu0 %v621
    %v765 = vpop.f32.mrf.mxu0
    %v766 = vadd.f32 %v604, %v765
    %767 = vmatmul.f32.gmra.mxu0 %v624
    %v768 = vpop.f32.mrf.mxu0
    %v769 = vadd.f32 %v609, %v768
    %770 = vmatmul.f32.gmra.mxu0 %v627
    %v771 = vpop.f32.mrf.mxu0
    %v772 = vadd.f32 %v614, %v771
    %773 = vdwg.mxu0
    %774 = vmatpush.msra.mxu0 0.0
    %775 = vmatpush.msra.mxu0 0.0
    %776 = vmatpush.msra.mxu0 0.0
    %777 = vmatpush.msra.mxu0 0.0
    %778 = vmatpush.msra.mxu0 0.0
    %779 = vmatpush.msra.mxu0 0.0
    %780 = vmatpush.msra.mxu0 0.0
    %781 = vmatpush.msra.mxu0 0.0
    %782 = vmatpush.msra.mxu0 0.0
    %783 = vmatpush.msra.mxu0 0.0
    %784 = vmatpush.msra.mxu0 0.0
    %785 = vmatpush.msra.mxu0 0.0
    %786 = vmatpush.msra.mxu0 %v573
    %787 = vmatpush.msra.mxu0 %v553
    %788 = vmatpush.msra.mxu0 %v533
    %789 = vmatpush.msra.mxu0 %v513
    %790 = vmatmul.f32.gmra.mxu0 %v618
    %v791 = vpop.f32.mrf.mxu0
    %v792 = vadd.f32 %v599, %v791
    %793 = vmatmul.f32.gmra.mxu0 %v621
    %v794 = vpop.f32.mrf.mxu0
    %v795 = vadd.f32 %v604, %v794
    %796 = vmatmul.f32.gmra.mxu0 %v624
    %v797 = vpop.f32.mrf.mxu0
    %v798 = vadd.f32 %v609, %v797
    %799 = vmatmul.f32.gmra.mxu0 %v627
    %v800 = vpop.f32.mrf.mxu0
    %v801 = vadd.f32 %v614, %v800
    %802 = vdwg.mxu0
    %803 = vmatpush.msra.mxu0 0.0
    %804 = vmatpush.msra.mxu0 0.0
    %805 = vmatpush.msra.mxu0 0.0
    %806 = vmatpush.msra.mxu0 0.0
    %807 = vmatpush.msra.mxu0 0.0
    %808 = vmatpush.msra.mxu0 0.0
    %809 = vmatpush.msra.mxu0 0.0
    %810 = vmatpush.msra.mxu0 0.0
    %811 = vmatpush.msra.mxu0 0.0
    %812 = vmatpush.msra.mxu0 0.0
    %813 = vmatpush.msra.mxu0 0.0
    %814 = vmatpush.msra.mxu0 0.0
    %815 = vmatpush.msra.mxu0 %v574
    %816 = vmatpush.msra.mxu0 %v554
    %817 = vmatpush.msra.mxu0 %v534
    %818 = vmatpush.msra.mxu0 %v514
    %819 = vmatmul.f32.gmra.mxu0 %v618
    %v820 = vpop.f32.mrf.mxu0
    %v821 = vadd.f32 %v599, %v820
    %822 = vmatmul.f32.gmra.mxu0 %v621
    %v823 = vpop.f32.mrf.mxu0
    %v824 = vadd.f32 %v604, %v823
    %825 = vmatmul.f32.gmra.mxu0 %v624
    %v826 = vpop.f32.mrf.mxu0
    %v827 = vadd.f32 %v609, %v826
    %828 = vmatmul.f32.gmra.mxu0 %v627
    %v829 = vpop.f32.mrf.mxu0
    %v830 = vadd.f32 %v614, %v829
    %831 = vdwg.mxu0
    %832 = vmatpush.msra.mxu0 0.0
    %833 = vmatpush.msra.mxu0 0.0
    %834 = vmatpush.msra.mxu0 0.0
    %835 = vmatpush.msra.mxu0 0.0
    %836 = vmatpush.msra.mxu0 0.0
    %837 = vmatpush.msra.mxu0 0.0
    %838 = vmatpush.msra.mxu0 0.0
    %839 = vmatpush.msra.mxu0 0.0
    %840 = vmatpush.msra.mxu0 0.0
    %841 = vmatpush.msra.mxu0 0.0
    %842 = vmatpush.msra.mxu0 0.0
    %843 = vmatpush.msra.mxu0 0.0
    %844 = vmatpush.msra.mxu0 %v575
    %845 = vmatpush.msra.mxu0 %v555
    %846 = vmatpush.msra.mxu0 %v535
    %847 = vmatpush.msra.mxu0 %v515
    %848 = vmatmul.f32.gmra.mxu0 %v618
    %v849 = vpop.f32.mrf.mxu0
    %v850 = vadd.f32 %v599, %v849
    %851 = vmatmul.f32.gmra.mxu0 %v621
    %v852 = vpop.f32.mrf.mxu0
    %v853 = vadd.f32 %v604, %v852
    %854 = vmatmul.f32.gmra.mxu0 %v624
    %v855 = vpop.f32.mrf.mxu0
    %v856 = vadd.f32 %v609, %v855
    %857 = vmatmul.f32.gmra.mxu0 %v627
    %v858 = vpop.f32.mrf.mxu0
    %v859 = vadd.f32 %v614, %v858
    %860 = vdwg.mxu0
    %861 = vmatpush.msra.mxu0 0.0
    %862 = vmatpush.msra.mxu0 0.0
    %863 = vmatpush.msra.mxu0 0.0
    %864 = vmatpush.msra.mxu0 0.0
    %865 = vmatpush.msra.mxu0 0.0
    %866 = vmatpush.msra.mxu0 0.0
    %867 = vmatpush.msra.mxu0 0.0
    %868 = vmatpush.msra.mxu0 0.0
    %869 = vmatpush.msra.mxu0 0.0
    %870 = vmatpush.msra.mxu0 0.0
    %871 = vmatpush.msra.mxu0 0.0
    %872 = vmatpush.msra.mxu0 0.0
    %873 = vmatpush.msra.mxu0 %v576
    %874 = vmatpush.msra.mxu0 %v556
    %875 = vmatpush.msra.mxu0 %v536
    %876 = vmatpush.msra.mxu0 %v516
    %877 = vmatmul.f32.gmra.mxu0 %v618
    %v878 = vpop.f32.mrf.mxu0
    %v879 = vadd.f32 %v599, %v878
    %880 = vmatmul.f32.gmra.mxu0 %v621
    %v881 = vpop.f32.mrf.mxu0
    %v882 = vadd.f32 %v604, %v881
    %883 = vmatmul.f32.gmra.mxu0 %v624
    %v884 = vpop.f32.mrf.mxu0
    %v885 = vadd.f32 %v609, %v884
    %886 = vmatmul.f32.gmra.mxu0 %v627
    %v887 = vpop.f32.mrf.mxu0
    %v888 = vadd.f32 %v614, %v887
    %889 = vdwg.mxu0
    %890 = vmatpush.msra.mxu0 0.0
    %891 = vmatpush.msra.mxu0 0.0
    %892 = vmatpush.msra.mxu0 0.0
    %893 = vmatpush.msra.mxu0 0.0
    %894 = vmatpush.msra.mxu0 0.0
    %895 = vmatpush.msra.mxu0 0.0
    %896 = vmatpush.msra.mxu0 0.0
    %897 = vmatpush.msra.mxu0 0.0
    %898 = vmatpush.msra.mxu0 0.0
    %899 = vmatpush.msra.mxu0 0.0
    %900 = vmatpush.msra.mxu0 0.0
    %901 = vmatpush.msra.mxu0 0.0
    %902 = vmatpush.msra.mxu0 %v577
    %903 = vmatpush.msra.mxu0 %v557
    %904 = vmatpush.msra.mxu0 %v537
    %905 = vmatpush.msra.mxu0 %v517
    %906 = vmatmul.f32.gmra.mxu0 %v618
    %v907 = vpop.f32.mrf.mxu0
    %v908 = vadd.f32 %v599, %v907
    %909 = vmatmul.f32.gmra.mxu0 %v621
    %v910 = vpop.f32.mrf.mxu0
    %v911 = vadd.f32 %v604, %v910
    %912 = vmatmul.f32.gmra.mxu0 %v624
    %v913 = vpop.f32.mrf.mxu0
    %v914 = vadd.f32 %v609, %v913
    %915 = vmatmul.f32.gmra.mxu0 %v627
    %v916 = vpop.f32.mrf.mxu0
    %v917 = vadd.f32 %v614, %v916
    %918 = vdwg.mxu0
    %919 = vmatpush.msra.mxu0 0.0
    %920 = vmatpush.msra.mxu0 0.0
    %921 = vmatpush.msra.mxu0 0.0
    %922 = vmatpush.msra.mxu0 0.0
    %923 = vmatpush.msra.mxu0 0.0
    %924 = vmatpush.msra.mxu0 0.0
    %925 = vmatpush.msra.mxu0 0.0
    %926 = vmatpush.msra.mxu0 0.0
    %927 = vmatpush.msra.mxu0 0.0
    %928 = vmatpush.msra.mxu0 0.0
    %929 = vmatpush.msra.mxu0 0.0
    %930 = vmatpush.msra.mxu0 0.0
    %931 = vmatpush.msra.mxu0 %v578
    %932 = vmatpush.msra.mxu0 %v558
    %933 = vmatpush.msra.mxu0 %v538
    %934 = vmatpush.msra.mxu0 %v518
    %935 = vmatmul.f32.gmra.mxu0 %v618
    %v936 = vpop.f32.mrf.mxu0
    %v937 = vadd.f32 %v599, %v936
    %938 = vmatmul.f32.gmra.mxu0 %v621
    %v939 = vpop.f32.mrf.mxu0
    %v940 = vadd.f32 %v604, %v939
    %941 = vmatmul.f32.gmra.mxu0 %v624
    %v942 = vpop.f32.mrf.mxu0
    %v943 = vadd.f32 %v609, %v942
    %944 = vmatmul.f32.gmra.mxu0 %v627
    %v945 = vpop.f32.mrf.mxu0
    %v946 = vadd.f32 %v614, %v945
    %947 = vdwg.mxu0
    %948 = vmatpush.msra.mxu0 0.0
    %949 = vmatpush.msra.mxu0 0.0
    %950 = vmatpush.msra.mxu0 0.0
    %951 = vmatpush.msra.mxu0 0.0
    %952 = vmatpush.msra.mxu0 0.0
    %953 = vmatpush.msra.mxu0 0.0
    %954 = vmatpush.msra.mxu0 0.0
    %955 = vmatpush.msra.mxu0 0.0
    %956 = vmatpush.msra.mxu0 0.0
    %957 = vmatpush.msra.mxu0 0.0
    %958 = vmatpush.msra.mxu0 0.0
    %959 = vmatpush.msra.mxu0 0.0
    %960 = vmatpush.msra.mxu0 %v579
    %961 = vmatpush.msra.mxu0 %v559
    %962 = vmatpush.msra.mxu0 %v539
    %963 = vmatpush.msra.mxu0 %v519
    %964 = vmatmul.f32.gmra.mxu0 %v618
    %v965 = vpop.f32.mrf.mxu0
    %v966 = vadd.f32 %v599, %v965
    %967 = vmatmul.f32.gmra.mxu0 %v621
    %v968 = vpop.f32.mrf.mxu0
    %v969 = vadd.f32 %v604, %v968
    %970 = vmatmul.f32.gmra.mxu0 %v624
    %v971 = vpop.f32.mrf.mxu0
    %v972 = vadd.f32 %v609, %v971
    %973 = vmatmul.f32.gmra.mxu0 %v627
    %v974 = vpop.f32.mrf.mxu0
    %v975 = vadd.f32 %v614, %v974
    %976 = vdwg.mxu0
    %977 = vmatpush.msra.mxu0 0.0
    %978 = vmatpush.msra.mxu0 0.0
    %979 = vmatpush.msra.mxu0 0.0
    %980 = vmatpush.msra.mxu0 0.0
    %981 = vmatpush.msra.mxu0 0.0
    %982 = vmatpush.msra.mxu0 0.0
    %983 = vmatpush.msra.mxu0 0.0
    %984 = vmatpush.msra.mxu0 0.0
    %985 = vmatpush.msra.mxu0 0.0
    %986 = vmatpush.msra.mxu0 0.0
    %987 = vmatpush.msra.mxu0 0.0
    %988 = vmatpush.msra.mxu0 0.0
    %989 = vmatpush.msra.mxu0 %v580
    %990 = vmatpush.msra.mxu0 %v560
    %991 = vmatpush.msra.mxu0 %v540
    %992 = vmatpush.msra.mxu0 %v520
    %993 = vmatmul.f32.gmra.mxu0 %v618
    %v994 = vpop.f32.mrf.mxu0
    %v995 = vadd.f32 %v599, %v994
    %996 = vmatmul.f32.gmra.mxu0 %v621
    %v997 = vpop.f32.mrf.mxu0
    %v998 = vadd.f32 %v604, %v997
    %999 = vmatmul.f32.gmra.mxu0 %v624
    %v1000 = vpop.f32.mrf.mxu0
    %v1001 = vadd.f32 %v609, %v1000
    %1002 = vmatmul.f32.gmra.mxu0 %v627
    %v1003 = vpop.f32.mrf.mxu0
    %v1004 = vadd.f32 %v614, %v1003
    %1005 = vdwg.mxu0
    %1006 = vmatpush.msra.mxu0 0.0
    %1007 = vmatpush.msra.mxu0 0.0
    %1008 = vmatpush.msra.mxu0 0.0
    %1009 = vmatpush.msra.mxu0 0.0
    %1010 = vmatpush.msra.mxu0 0.0
    %1011 = vmatpush.msra.mxu0 0.0
    %1012 = vmatpush.msra.mxu0 0.0
    %1013 = vmatpush.msra.mxu0 0.0
    %1014 = vmatpush.msra.mxu0 0.0
    %1015 = vmatpush.msra.mxu0 0.0
    %1016 = vmatpush.msra.mxu0 0.0
    %1017 = vmatpush.msra.mxu0 0.0
    %1018 = vmatpush.msra.mxu0 %v581
    %1019 = vmatpush.msra.mxu0 %v561
    %1020 = vmatpush.msra.mxu0 %v541
    %1021 = vmatpush.msra.mxu0 %v521
    %1022 = vmatmul.f32.gmra.mxu0 %v618
    %v1023 = vpop.f32.mrf.mxu0
    %v1024 = vadd.f32 %v599, %v1023
    %1025 = vmatmul.f32.gmra.mxu0 %v621
    %v1026 = vpop.f32.mrf.mxu0
    %v1027 = vadd.f32 %v604, %v1026
    %1028 = vmatmul.f32.gmra.mxu0 %v624
    %v1029 = vpop.f32.mrf.mxu0
    %v1030 = vadd.f32 %v609, %v1029
    %1031 = vmatmul.f32.gmra.mxu0 %v627
    %v1032 = vpop.f32.mrf.mxu0
    %v1033 = vadd.f32 %v614, %v1032
    %1034 = vdwg.mxu0
    %1035 = vmatpush.msra.mxu0 0.0
    %1036 = vmatpush.msra.mxu0 0.0
    %1037 = vmatpush.msra.mxu0 0.0
    %1038 = vmatpush.msra.mxu0 0.0
    %1039 = vmatpush.msra.mxu0 0.0
    %1040 = vmatpush.msra.mxu0 0.0
    %1041 = vmatpush.msra.mxu0 0.0
    %1042 = vmatpush.msra.mxu0 0.0
    %1043 = vmatpush.msra.mxu0 0.0
    %1044 = vmatpush.msra.mxu0 0.0
    %1045 = vmatpush.msra.mxu0 0.0
    %1046 = vmatpush.msra.mxu0 0.0
    %1047 = vmatpush.msra.mxu0 %v582
    %1048 = vmatpush.msra.mxu0 %v562
    %1049 = vmatpush.msra.mxu0 %v542
    %1050 = vmatpush.msra.mxu0 %v522
    %1051 = vmatmul.f32.gmra.mxu0 %v618
    %v1052 = vpop.f32.mrf.mxu0
    %v1053 = vadd.f32 %v599, %v1052
    %1054 = vmatmul.f32.gmra.mxu0 %v621
    %v1055 = vpop.f32.mrf.mxu0
    %v1056 = vadd.f32 %v604, %v1055
    %1057 = vmatmul.f32.gmra.mxu0 %v624
    %v1058 = vpop.f32.mrf.mxu0
    %v1059 = vadd.f32 %v609, %v1058
    %1060 = vmatmul.f32.gmra.mxu0 %v627
    %v1061 = vpop.f32.mrf.mxu0
    %v1062 = vadd.f32 %v614, %v1061
    %1063 = vdwg.mxu0
    %1064 = vmatpush.msra.mxu0 0.0
    %1065 = vmatpush.msra.mxu0 0.0
    %1066 = vmatpush.msra.mxu0 0.0
    %1067 = vmatpush.msra.mxu0 0.0
    %1068 = vmatpush.msra.mxu0 0.0
    %1069 = vmatpush.msra.mxu0 0.0
    %1070 = vmatpush.msra.mxu0 0.0
    %1071 = vmatpush.msra.mxu0 0.0
    %1072 = vmatpush.msra.mxu0 0.0
    %1073 = vmatpush.msra.mxu0 0.0
    %1074 = vmatpush.msra.mxu0 0.0
    %1075 = vmatpush.msra.mxu0 0.0
    %1076 = vmatpush.msra.mxu0 %v583
    %1077 = vmatpush.msra.mxu0 %v563
    %1078 = vmatpush.msra.mxu0 %v543
    %1079 = vmatpush.msra.mxu0 %v523
    %1080 = vmatmul.f32.gmra.mxu0 %v618
    %v1081 = vpop.f32.mrf.mxu0
    %v1082 = vadd.f32 %v599, %v1081
    %1083 = vmatmul.f32.gmra.mxu0 %v621
    %v1084 = vpop.f32.mrf.mxu0
    %v1085 = vadd.f32 %v604, %v1084
    %1086 = vmatmul.f32.gmra.mxu0 %v624
    %v1087 = vpop.f32.mrf.mxu0
    %v1088 = vadd.f32 %v609, %v1087
    %1089 = vmatmul.f32.gmra.mxu0 %v627
    %v1090 = vpop.f32.mrf.mxu0
    %v1091 = vadd.f32 %v614, %v1090
    %1092 = vdwg.mxu0
    %1093 = vmatpush.msra.mxu0 0.0
    %1094 = vmatpush.msra.mxu0 0.0
    %1095 = vmatpush.msra.mxu0 0.0
    %1096 = vmatpush.msra.mxu0 0.0
    %1097 = vmatpush.msra.mxu0 0.0
    %1098 = vmatpush.msra.mxu0 0.0
    %1099 = vmatpush.msra.mxu0 0.0
    %1100 = vmatpush.msra.mxu0 0.0
    %1101 = vmatpush.msra.mxu0 0.0
    %1102 = vmatpush.msra.mxu0 0.0
    %1103 = vmatpush.msra.mxu0 0.0
    %1104 = vmatpush.msra.mxu0 0.0
    %1105 = vmatpush.msra.mxu0 %v584
    %1106 = vmatpush.msra.mxu0 %v564
    %1107 = vmatpush.msra.mxu0 %v544
    %1108 = vmatpush.msra.mxu0 %v524
    %1109 = vmatmul.f32.gmra.mxu0 %v618
    %v1110 = vpop.f32.mrf.mxu0
    %v1111 = vadd.f32 %v599, %v1110
    %1112 = vmatmul.f32.gmra.mxu0 %v621
    %v1113 = vpop.f32.mrf.mxu0
    %v1114 = vadd.f32 %v604, %v1113
    %1115 = vmatmul.f32.gmra.mxu0 %v624
    %v1116 = vpop.f32.mrf.mxu0
    %v1117 = vadd.f32 %v609, %v1116
    %1118 = vmatmul.f32.gmra.mxu0 %v627
    %v1119 = vpop.f32.mrf.mxu0
    %v1120 = vadd.f32 %v614, %v1119
    %1121 = vdwg.mxu0
    %1122 = vmatpush.msra.mxu0 0.0
    %1123 = vmatpush.msra.mxu0 0.0
    %1124 = vmatpush.msra.mxu0 0.0
    %1125 = vmatpush.msra.mxu0 0.0
    %1126 = vmatpush.msra.mxu0 0.0
    %1127 = vmatpush.msra.mxu0 0.0
    %1128 = vmatpush.msra.mxu0 0.0
    %1129 = vmatpush.msra.mxu0 0.0
    %1130 = vmatpush.msra.mxu0 0.0
    %1131 = vmatpush.msra.mxu0 0.0
    %1132 = vmatpush.msra.mxu0 0.0
    %1133 = vmatpush.msra.mxu0 0.0
    %1134 = vmatpush.msra.mxu0 %v585
    %1135 = vmatpush.msra.mxu0 %v565
    %1136 = vmatpush.msra.mxu0 %v545
    %1137 = vmatpush.msra.mxu0 %v525
    %1138 = vmatmul.f32.gmra.mxu0 %v618
    %v1139 = vpop.f32.mrf.mxu0
    %v1140 = vadd.f32 %v599, %v1139
    %1141 = vmatmul.f32.gmra.mxu0 %v621
    %v1142 = vpop.f32.mrf.mxu0
    %v1143 = vadd.f32 %v604, %v1142
    %1144 = vmatmul.f32.gmra.mxu0 %v624
    %v1145 = vpop.f32.mrf.mxu0
    %v1146 = vadd.f32 %v609, %v1145
    %1147 = vmatmul.f32.gmra.mxu0 %v627
    %v1148 = vpop.f32.mrf.mxu0
    %v1149 = vadd.f32 %v614, %v1148
    %1150 = vdwg.mxu0
    %1151 = vmatpush.msra.mxu0 0.0
    %1152 = vmatpush.msra.mxu0 0.0
    %1153 = vmatpush.msra.mxu0 0.0
    %1154 = vmatpush.msra.mxu0 0.0
    %1155 = vmatpush.msra.mxu0 0.0
    %1156 = vmatpush.msra.mxu0 0.0
    %1157 = vmatpush.msra.mxu0 0.0
    %1158 = vmatpush.msra.mxu0 0.0
    %1159 = vmatpush.msra.mxu0 0.0
    %1160 = vmatpush.msra.mxu0 0.0
    %1161 = vmatpush.msra.mxu0 0.0
    %1162 = vmatpush.msra.mxu0 0.0
    %1163 = vmatpush.msra.mxu0 %v586
    %1164 = vmatpush.msra.mxu0 %v566
    %1165 = vmatpush.msra.mxu0 %v546
    %1166 = vmatpush.msra.mxu0 %v526
    %1167 = vmatmul.f32.gmra.mxu0 %v618
    %v1168 = vpop.f32.mrf.mxu0
    %v1169 = vadd.f32 %v599, %v1168
    %1170 = vmatmul.f32.gmra.mxu0 %v621
    %v1171 = vpop.f32.mrf.mxu0
    %v1172 = vadd.f32 %v604, %v1171
    %1173 = vmatmul.f32.gmra.mxu0 %v624
    %v1174 = vpop.f32.mrf.mxu0
    %v1175 = vadd.f32 %v609, %v1174
    %1176 = vmatmul.f32.gmra.mxu0 %v627
    %v1177 = vpop.f32.mrf.mxu0
    %v1178 = vadd.f32 %v614, %v1177
    %1179 = vdwg.mxu0
    %1180 = vmatpush.msra.mxu0 0.0
    %1181 = vmatpush.msra.mxu0 0.0
    %1182 = vmatpush.msra.mxu0 0.0
    %1183 = vmatpush.msra.mxu0 0.0
    %1184 = vmatpush.msra.mxu0 0.0
    %1185 = vmatpush.msra.mxu0 0.0
    %1186 = vmatpush.msra.mxu0 0.0
    %1187 = vmatpush.msra.mxu0 0.0
    %1188 = vmatpush.msra.mxu0 0.0
    %1189 = vmatpush.msra.mxu0 0.0
    %1190 = vmatpush.msra.mxu0 0.0
    %1191 = vmatpush.msra.mxu0 0.0
    %1192 = vmatpush.msra.mxu0 %v587
    %1193 = vmatpush.msra.mxu0 %v567
    %1194 = vmatpush.msra.mxu0 %v547
    %1195 = vmatpush.msra.mxu0 %v527
    %1196 = vmatmul.f32.gmra.mxu0 %v618
    %v1197 = vpop.f32.mrf.mxu0
    %v1198 = vadd.f32 %v599, %v1197
    %1199 = vmatmul.f32.gmra.mxu0 %v621
    %v1200 = vpop.f32.mrf.mxu0
    %v1201 = vadd.f32 %v604, %v1200
    %1202 = vmatmul.f32.gmra.mxu0 %v624
    %v1203 = vpop.f32.mrf.mxu0
    %v1204 = vadd.f32 %v609, %v1203
    %1205 = vmatmul.f32.gmra.mxu0 %v627
    %v1206 = vpop.f32.mrf.mxu0
    %v1207 = vadd.f32 %v614, %v1206
    %1208 = vdwg.mxu0
    %v1209 = vtanh.pop %v647
    %v1210 = vtanh.pop %v676
    %v1211 = vtanh.pop %v705
    %v1212 = vtanh.pop %v734
    %v1213 = vtanh.pop %v763
    %v1214 = vtanh.pop %v792
    %v1215 = vtanh.pop %v821
    %v1216 = vtanh.pop %v850
    %v1217 = vtanh.pop %v879
    %v1218 = vtanh.pop %v908
    %v1219 = vtanh.pop %v937
    %v1220 = vtanh.pop %v966
    %v1221 = vtanh.pop %v995
    %v1222 = vtanh.pop %v1024
    %v1223 = vtanh.pop %v1053
    %v1224 = vtanh.pop %v1082
    %v1225 = vtanh.pop %v1111
    %v1226 = vtanh.pop %v1140
    %v1227 = vtanh.pop %v1169
    %v1228 = vtanh.pop %v1198
    %v1229 = vtanh.pop %v650
    %v1230 = vtanh.pop %v679
    %v1231 = vtanh.pop %v708
    %v1232 = vtanh.pop %v737
    %v1233 = vtanh.pop %v766
    %v1234 = vtanh.pop %v795
    %v1235 = vtanh.pop %v824
    %v1236 = vtanh.pop %v853
    %v1237 = vtanh.pop %v882
    %v1238 = vtanh.pop %v911
    %v1239 = vtanh.pop %v940
    %v1240 = vtanh.pop %v969
    %v1241 = vtanh.pop %v998
    %v1242 = vtanh.pop %v1027
    %v1243 = vtanh.pop %v1056
    %v1244 = vtanh.pop %v1085
    %v1245 = vtanh.pop %v1114
    %v1246 = vtanh.pop %v1143
    %v1247 = vtanh.pop %v1172
    %v1248 = vtanh.pop %v1201
    %v1249 = vtanh.pop %v653
    %v1250 = vtanh.pop %v682
    %v1251 = vtanh.pop %v711
    %v1252 = vtanh.pop %v740
    %v1253 = vtanh.pop %v769
    %v1254 = vtanh.pop %v798
    %v1255 = vtanh.pop %v827
    %v1256 = vtanh.pop %v856
    %v1257 = vtanh.pop %v885
    %v1258 = vtanh.pop %v914
    %v1259 = vtanh.pop %v943
    %v1260 = vtanh.pop %v972
    %v1261 = vtanh.pop %v1001
    %v1262 = vtanh.pop %v1030
    %v1263 = vtanh.pop %v1059
    %v1264 = vtanh.pop %v1088
    %v1265 = vtanh.pop %v1117
    %v1266 = vtanh.pop %v1146
    %v1267 = vtanh.pop %v1175
    %v1268 = vtanh.pop %v1204
    %v1269 = vtanh.pop %v656
    %v1270 = vtanh.pop %v685
    %v1271 = vtanh.pop %v714
    %v1272 = vtanh.pop %v743
    %v1273 = vtanh.pop %v772
    %v1274 = vtanh.pop %v801
    %v1275 = vtanh.pop %v830
    %v1276 = vtanh.pop %v859
    %v1277 = vtanh.pop %v888
    %v1278 = vtanh.pop %v917
    %v1279 = vtanh.pop %v946
    %v1280 = vtanh.pop %v975
    %v1281 = vtanh.pop %v1004
    %v1282 = vtanh.pop %v1033
    %v1283 = vtanh.pop %v1062
    %v1284 = vtanh.pop %v1091
    %v1285 = vtanh.pop %v1120
    %v1286 = vtanh.pop %v1149
    %v1287 = vtanh.pop %v1178
    %v1288 = vtanh.pop %v1207
    %v1289 = vld [vmem:[%s5] sm:$0x7]
    %v1290 = vld [vmem:[%s6] sm:$0x7]
    %1292 = vset.pattern.permute.xlu0 0
    %1293 = vperm.xlu0 %1292, %v1290
    %v1294 = vpop.permute.xlu0 %1293
    %v1297 = vsel %vm616, %v1289, 0
    %1299 = vmatpush.msra.mxu0 0.0
    %1300 = vmatpush.msra.mxu0 0.0
    %1301 = vmatpush.msra.mxu0 0.0
    %1302 = vmatpush.msra.mxu0 0.0
    %1303 = vmatpush.msra.mxu0 0.0
    %1304 = vmatpush.msra.mxu0 0.0
    %1305 = vmatpush.msra.mxu0 0.0
    %1306 = vmatpush.msra.mxu0 0.0
    %1307 = vmatpush.msra.mxu0 0.0
    %1308 = vmatpush.msra.mxu0 0.0
    %1309 = vmatpush.msra.mxu0 0.0
    %1310 = vmatpush.msra.mxu0 0.0
    %1311 = vmatpush.msra.mxu0 %v1269
    %1312 = vmatpush.msra.mxu0 %v1249
    %1313 = vmatpush.msra.mxu0 %v1229
    %1314 = vmatpush.msra.mxu0 %v1209
    %1315 = vmatmul.f32.gmra.mxu0 %v1297
    %v1316 = vpop.f32.mrf.mxu0
    %v1317 = vadd.f32 %v1294, %v1316
    %1318 = vdwg.mxu0
    %1319 = vmatpush.msra.mxu0 0.0
    %1320 = vmatpush.msra.mxu0 0.0
    %1321 = vmatpush.msra.mxu0 0.0
    %1322 = vmatpush.msra.mxu0 0.0
    %1323 = vmatpush.msra.mxu0 0.0
    %1324 = vmatpush.msra.mxu0 0.0
    %1325 = vmatpush.msra.mxu0 0.0
    %1326 = vmatpush.msra.mxu0 0.0
    %1327 = vmatpush.msra.mxu0 0.0
    %1328 = vmatpush.msra.mxu0 0.0
    %1329 = vmatpush.msra.mxu0 0.0
    %1330 = vmatpush.msra.mxu0 0.0
    %1331 = vmatpush.msra.mxu0 %v1270
    %1332 = vmatpush.msra.mxu0 %v1250
    %1333 = vmatpush.msra.mxu0 %v1230
    %1334 = vmatpush.msra.mxu0 %v1210
    %1335 = vmatmul.f32.gmra.mxu0 %v1297
    %v1336 = vpop.f32.mrf.mxu0
    %v1337 = vadd.f32 %v1294, %v1336
    %1338 = vdwg.mxu0
    %1339 = vmatpush.msra.mxu0 0.0
    %1340 = vmatpush.msra.mxu0 0.0
    %1341 = vmatpush.msra.mxu0 0.0
    %1342 = vmatpush.msra.mxu0 0.0
    %1343 = vmatpush.msra.mxu0 0.0
    %1344 = vmatpush.msra.mxu0 0.0
    %1345 = vmatpush.msra.mxu0 0.0
    %1346 = vmatpush.msra.mxu0 0.0
    %1347 = vmatpush.msra.mxu0 0.0
    %1348 = vmatpush.msra.mxu0 0.0
    %1349 = vmatpush.msra.mxu0 0.0
    %1350 = vmatpush.msra.mxu0 0.0
    %1351 = vmatpush.msra.mxu0 %v1271
    %1352 = vmatpush.msra.mxu0 %v1251
    %1353 = vmatpush.msra.mxu0 %v1231
    %1354 = vmatpush.msra.mxu0 %v1211
    %1355 = vmatmul.f32.gmra.mxu0 %v1297
    %v1356 = vpop.f32.mrf.mxu0
    %v1357 = vadd.f32 %v1294, %v1356
    %1358 = vdwg.mxu0
    %1359 = vmatpush.msra.mxu0 0.0
    %1360 = vmatpush.msra.mxu0 0.0
    %1361 = vmatpush.msra.mxu0 0.0
    %1362 = vmatpush.msra.mxu0 0.0
    %1363 = vmatpush.msra.mxu0 0.0
    %1364 = vmatpush.msra.mxu0 0.0
    %1365 = vmatpush.msra.mxu0 0.0
    %1366 = vmatpush.msra.mxu0 0.0
    %1367 = vmatpush.msra.mxu0 0.0
    %1368 = vmatpush.msra.mxu0 0.0
    %1369 = vmatpush.msra.mxu0 0.0
    %1370 = vmatpush.msra.mxu0 0.0
    %1371 = vmatpush.msra.mxu0 %v1272
    %1372 = vmatpush.msra.mxu0 %v1252
    %1373 = vmatpush.msra.mxu0 %v1232
    %1374 = vmatpush.msra.mxu0 %v1212
    %1375 = vmatmul.f32.gmra.mxu0 %v1297
    %v1376 = vpop.f32.mrf.mxu0
    %v1377 = vadd.f32 %v1294, %v1376
    %1378 = vdwg.mxu0
    %1379 = vmatpush.msra.mxu0 0.0
    %1380 = vmatpush.msra.mxu0 0.0
    %1381 = vmatpush.msra.mxu0 0.0
    %1382 = vmatpush.msra.mxu0 0.0
    %1383 = vmatpush.msra.mxu0 0.0
    %1384 = vmatpush.msra.mxu0 0.0
    %1385 = vmatpush.msra.mxu0 0.0
    %1386 = vmatpush.msra.mxu0 0.0
    %1387 = vmatpush.msra.mxu0 0.0
    %1388 = vmatpush.msra.mxu0 0.0
    %1389 = vmatpush.msra.mxu0 0.0
    %1390 = vmatpush.msra.mxu0 0.0
    %1391 = vmatpush.msra.mxu0 %v1273
    %1392 = vmatpush.msra.mxu0 %v1253
    %1393 = vmatpush.msra.mxu0 %v1233
    %1394 = vmatpush.msra.mxu0 %v1213
    %1395 = vmatmul.f32.gmra.mxu0 %v1297
    %v1396 = vpop.f32.mrf.mxu0
    %v1397 = vadd.f32 %v1294, %v1396
    %1398 = vdwg.mxu0
    %1399 = vmatpush.msra.mxu0 0.0
    %1400 = vmatpush.msra.mxu0 0.0
    %1401 = vmatpush.msra.mxu0 0.0
    %1402 = vmatpush.msra.mxu0 0.0
    %1403 = vmatpush.msra.mxu0 0.0
    %1404 = vmatpush.msra.mxu0 0.0
    %1405 = vmatpush.msra.mxu0 0.0
    %1406 = vmatpush.msra.mxu0 0.0
    %1407 = vmatpush.msra.mxu0 0.0
    %1408 = vmatpush.msra.mxu0 0.0
    %1409 = vmatpush.msra.mxu0 0.0
    %1410 = vmatpush.msra.mxu0 0.0
    %1411 = vmatpush.msra.mxu0 %v1274
    %1412 = vmatpush.msra.mxu0 %v1254
    %1413 = vmatpush.msra.mxu0 %v1234
    %1414 = vmatpush.msra.mxu0 %v1214
    %1415 = vmatmul.f32.gmra.mxu0 %v1297
    %v1416 = vpop.f32.mrf.mxu0
    %v1417 = vadd.f32 %v1294, %v1416
    %1418 = vdwg.mxu0
    %1419 = vmatpush.msra.mxu0 0.0
    %1420 = vmatpush.msra.mxu0 0.0
    %1421 = vmatpush.msra.mxu0 0.0
    %1422 = vmatpush.msra.mxu0 0.0
    %1423 = vmatpush.msra.mxu0 0.0
    %1424 = vmatpush.msra.mxu0 0.0
    %1425 = vmatpush.msra.mxu0 0.0
    %1426 = vmatpush.msra.mxu0 0.0
    %1427 = vmatpush.msra.mxu0 0.0
    %1428 = vmatpush.msra.mxu0 0.0
    %1429 = vmatpush.msra.mxu0 0.0
    %1430 = vmatpush.msra.mxu0 0.0
    %1431 = vmatpush.msra.mxu0 %v1275
    %1432 = vmatpush.msra.mxu0 %v1255
    %1433 = vmatpush.msra.mxu0 %v1235
    %1434 = vmatpush.msra.mxu0 %v1215
    %1435 = vmatmul.f32.gmra.mxu0 %v1297
    %v1436 = vpop.f32.mrf.mxu0
    %v1437 = vadd.f32 %v1294, %v1436
    %1438 = vdwg.mxu0
    %1439 = vmatpush.msra.mxu0 0.0
    %1440 = vmatpush.msra.mxu0 0.0
    %1441 = vmatpush.msra.mxu0 0.0
    %1442 = vmatpush.msra.mxu0 0.0
    %1443 = vmatpush.msra.mxu0 0.0
    %1444 = vmatpush.msra.mxu0 0.0
    %1445 = vmatpush.msra.mxu0 0.0
    %1446 = vmatpush.msra.mxu0 0.0
    %1447 = vmatpush.msra.mxu0 0.0
    %1448 = vmatpush.msra.mxu0 0.0
    %1449 = vmatpush.msra.mxu0 0.0
    %1450 = vmatpush.msra.mxu0 0.0
    %1451 = vmatpush.msra.mxu0 %v1276
    %1452 = vmatpush.msra.mxu0 %v1256
    %1453 = vmatpush.msra.mxu0 %v1236
    %1454 = vmatpush.msra.mxu0 %v1216
    %1455 = vmatmul.f32.gmra.mxu0 %v1297
    %v1456 = vpop.f32.mrf.mxu0
    %v1457 = vadd.f32 %v1294, %v1456
    %1458 = vdwg.mxu0
    %1459 = vmatpush.msra.mxu0 0.0
    %1460 = vmatpush.msra.mxu0 0.0
    %1461 = vmatpush.msra.mxu0 0.0
    %1462 = vmatpush.msra.mxu0 0.0
    %1463 = vmatpush.msra.mxu0 0.0
    %1464 = vmatpush.msra.mxu0 0.0
    %1465 = vmatpush.msra.mxu0 0.0
    %1466 = vmatpush.msra.mxu0 0.0
    %1467 = vmatpush.msra.mxu0 0.0
    %1468 = vmatpush.msra.mxu0 0.0
    %1469 = vmatpush.msra.mxu0 0.0
    %1470 = vmatpush.msra.mxu0 0.0
    %1471 = vmatpush.msra.mxu0 %v1277
    %1472 = vmatpush.msra.mxu0 %v1257
    %1473 = vmatpush.msra.mxu0 %v1237
    %1474 = vmatpush.msra.mxu0 %v1217
    %1475 = vmatmul.f32.gmra.mxu0 %v1297
    %v1476 = vpop.f32.mrf.mxu0
    %v1477 = vadd.f32 %v1294, %v1476
    %1478 = vdwg.mxu0
    %1479 = vmatpush.msra.mxu0 0.0
    %1480 = vmatpush.msra.mxu0 0.0
    %1481 = vmatpush.msra.mxu0 0.0
    %1482 = vmatpush.msra.mxu0 0.0
    %1483 = vmatpush.msra.mxu0 0.0
    %1484 = vmatpush.msra.mxu0 0.0
    %1485 = vmatpush.msra.mxu0 0.0
    %1486 = vmatpush.msra.mxu0 0.0
    %1487 = vmatpush.msra.mxu0 0.0
    %1488 = vmatpush.msra.mxu0 0.0
    %1489 = vmatpush.msra.mxu0 0.0
    %1490 = vmatpush.msra.mxu0 0.0
    %1491 = vmatpush.msra.mxu0 %v1278
    %1492 = vmatpush.msra.mxu0 %v1258
    %1493 = vmatpush.msra.mxu0 %v1238
    %1494 = vmatpush.msra.mxu0 %v1218
    %1495 = vmatmul.f32.gmra.mxu0 %v1297
    %v1496 = vpop.f32.mrf.mxu0
    %v1497 = vadd.f32 %v1294, %v1496
    %1498 = vdwg.mxu0
    %1499 = vmatpush.msra.mxu0 0.0
    %1500 = vmatpush.msra.mxu0 0.0
    %1501 = vmatpush.msra.mxu0 0.0
    %1502 = vmatpush.msra.mxu0 0.0
    %1503 = vmatpush.msra.mxu0 0.0
    %1504 = vmatpush.msra.mxu0 0.0
    %1505 = vmatpush.msra.mxu0 0.0
    %1506 = vmatpush.msra.mxu0 0.0
    %1507 = vmatpush.msra.mxu0 0.0
    %1508 = vmatpush.msra.mxu0 0.0
    %1509 = vmatpush.msra.mxu0 0.0
    %1510 = vmatpush.msra.mxu0 0.0
    %1511 = vmatpush.msra.mxu0 %v1279
    %1512 = vmatpush.msra.mxu0 %v1259
    %1513 = vmatpush.msra.mxu0 %v1239
    %1514 = vmatpush.msra.mxu0 %v1219
    %1515 = vmatmul.f32.gmra.mxu0 %v1297
    %v1516 = vpop.f32.mrf.mxu0
    %v1517 = vadd.f32 %v1294, %v1516
    %1518 = vdwg.mxu0
    %1519 = vmatpush.msra.mxu0 0.0
    %1520 = vmatpush.msra.mxu0 0.0
    %1521 = vmatpush.msra.mxu0 0.0
    %1522 = vmatpush.msra.mxu0 0.0
    %1523 = vmatpush.msra.mxu0 0.0
    %1524 = vmatpush.msra.mxu0 0.0
    %1525 = vmatpush.msra.mxu0 0.0
    %1526 = vmatpush.msra.mxu0 0.0
    %1527 = vmatpush.msra.mxu0 0.0
    %1528 = vmatpush.msra.mxu0 0.0
    %1529 = vmatpush.msra.mxu0 0.0
    %1530 = vmatpush.msra.mxu0 0.0
    %1531 = vmatpush.msra.mxu0 %v1280
    %1532 = vmatpush.msra.mxu0 %v1260
    %1533 = vmatpush.msra.mxu0 %v1240
    %1534 = vmatpush.msra.mxu0 %v1220
    %1535 = vmatmul.f32.gmra.mxu0 %v1297
    %v1536 = vpop.f32.mrf.mxu0
    %v1537 = vadd.f32 %v1294, %v1536
    %1538 = vdwg.mxu0
    %1539 = vmatpush.msra.mxu0 0.0
    %1540 = vmatpush.msra.mxu0 0.0
    %1541 = vmatpush.msra.mxu0 0.0
    %1542 = vmatpush.msra.mxu0 0.0
    %1543 = vmatpush.msra.mxu0 0.0
    %1544 = vmatpush.msra.mxu0 0.0
    %1545 = vmatpush.msra.mxu0 0.0
    %1546 = vmatpush.msra.mxu0 0.0
    %1547 = vmatpush.msra.mxu0 0.0
    %1548 = vmatpush.msra.mxu0 0.0
    %1549 = vmatpush.msra.mxu0 0.0
    %1550 = vmatpush.msra.mxu0 0.0
    %1551 = vmatpush.msra.mxu0 %v1281
    %1552 = vmatpush.msra.mxu0 %v1261
    %1553 = vmatpush.msra.mxu0 %v1241
    %1554 = vmatpush.msra.mxu0 %v1221
    %1555 = vmatmul.f32.gmra.mxu0 %v1297
    %v1556 = vpop.f32.mrf.mxu0
    %v1557 = vadd.f32 %v1294, %v1556
    %1558 = vdwg.mxu0
    %1559 = vmatpush.msra.mxu0 0.0
    %1560 = vmatpush.msra.mxu0 0.0
    %1561 = vmatpush.msra.mxu0 0.0
    %1562 = vmatpush.msra.mxu0 0.0
    %1563 = vmatpush.msra.mxu0 0.0
    %1564 = vmatpush.msra.mxu0 0.0
    %1565 = vmatpush.msra.mxu0 0.0
    %1566 = vmatpush.msra.mxu0 0.0
    %1567 = vmatpush.msra.mxu0 0.0
    %1568 = vmatpush.msra.mxu0 0.0
    %1569 = vmatpush.msra.mxu0 0.0
    %1570 = vmatpush.msra.mxu0 0.0
    %1571 = vmatpush.msra.mxu0 %v1282
    %1572 = vmatpush.msra.mxu0 %v1262
    %1573 = vmatpush.msra.mxu0 %v1242
    %1574 = vmatpush.msra.mxu0 %v1222
    %1575 = vmatmul.f32.gmra.mxu0 %v1297
    %v1576 = vpop.f32.mrf.mxu0
    %v1577 = vadd.f32 %v1294, %v1576
    %1578 = vdwg.mxu0
    %1579 = vmatpush.msra.mxu0 0.0
    %1580 = vmatpush.msra.mxu0 0.0
    %1581 = vmatpush.msra.mxu0 0.0
    %1582 = vmatpush.msra.mxu0 0.0
    %1583 = vmatpush.msra.mxu0 0.0
    %1584 = vmatpush.msra.mxu0 0.0
    %1585 = vmatpush.msra.mxu0 0.0
    %1586 = vmatpush.msra.mxu0 0.0
    %1587 = vmatpush.msra.mxu0 0.0
    %1588 = vmatpush.msra.mxu0 0.0
    %1589 = vmatpush.msra.mxu0 0.0
    %1590 = vmatpush.msra.mxu0 0.0
    %1591 = vmatpush.msra.mxu0 %v1283
    %1592 = vmatpush.msra.mxu0 %v1263
    %1593 = vmatpush.msra.mxu0 %v1243
    %1594 = vmatpush.msra.mxu0 %v1223
    %1595 = vmatmul.f32.gmra.mxu0 %v1297
    %v1596 = vpop.f32.mrf.mxu0
    %v1597 = vadd.f32 %v1294, %v1596
    %1598 = vdwg.mxu0
    %1599 = vmatpush.msra.mxu0 0.0
    %1600 = vmatpush.msra.mxu0 0.0
    %1601 = vmatpush.msra.mxu0 0.0
    %1602 = vmatpush.msra.mxu0 0.0
    %1603 = vmatpush.msra.mxu0 0.0
    %1604 = vmatpush.msra.mxu0 0.0
    %1605 = vmatpush.msra.mxu0 0.0
    %1606 = vmatpush.msra.mxu0 0.0
    %1607 = vmatpush.msra.mxu0 0.0
    %1608 = vmatpush.msra.mxu0 0.0
    %1609 = vmatpush.msra.mxu0 0.0
    %1610 = vmatpush.msra.mxu0 0.0
    %1611 = vmatpush.msra.mxu0 %v1284
    %1612 = vmatpush.msra.mxu0 %v1264
    %1613 = vmatpush.msra.mxu0 %v1244
    %1614 = vmatpush.msra.mxu0 %v1224
    %1615 = vmatmul.f32.gmra.mxu0 %v1297
    %v1616 = vpop.f32.mrf.mxu0
    %v1617 = vadd.f32 %v1294, %v1616
    %1618 = vdwg.mxu0
    %1619 = vmatpush.msra.mxu0 0.0
    %1620 = vmatpush.msra.mxu0 0.0
    %1621 = vmatpush.msra.mxu0 0.0
    %1622 = vmatpush.msra.mxu0 0.0
    %1623 = vmatpush.msra.mxu0 0.0
    %1624 = vmatpush.msra.mxu0 0.0
    %1625 = vmatpush.msra.mxu0 0.0
    %1626 = vmatpush.msra.mxu0 0.0
    %1627 = vmatpush.msra.mxu0 0.0
    %1628 = vmatpush.msra.mxu0 0.0
    %1629 = vmatpush.msra.mxu0 0.0
    %1630 = vmatpush.msra.mxu0 0.0
    %1631 = vmatpush.msra.mxu0 %v1285
    %1632 = vmatpush.msra.mxu0 %v1265
    %1633 = vmatpush.msra.mxu0 %v1245
    %1634 = vmatpush.msra.mxu0 %v1225
    %1635 = vmatmul.f32.gmra.mxu0 %v1297
    %v1636 = vpop.f32.mrf.mxu0
    %v1637 = vadd.f32 %v1294, %v1636
    %1638 = vdwg.mxu0
    %1639 = vmatpush.msra.mxu0 0.0
    %1640 = vmatpush.msra.mxu0 0.0
    %1641 = vmatpush.msra.mxu0 0.0
    %1642 = vmatpush.msra.mxu0 0.0
    %1643 = vmatpush.msra.mxu0 0.0
    %1644 = vmatpush.msra.mxu0 0.0
    %1645 = vmatpush.msra.mxu0 0.0
    %1646 = vmatpush.msra.mxu0 0.0
    %1647 = vmatpush.msra.mxu0 0.0
    %1648 = vmatpush.msra.mxu0 0.0
    %1649 = vmatpush.msra.mxu0 0.0
    %1650 = vmatpush.msra.mxu0 0.0
    %1651 = vmatpush.msra.mxu0 %v1286
    %1652 = vmatpush.msra.mxu0 %v1266
    %1653 = vmatpush.msra.mxu0 %v1246
    %1654 = vmatpush.msra.mxu0 %v1226
    %1655 = vmatmul.f32.gmra.mxu0 %v1297
    %v1656 = vpop.f32.mrf.mxu0
    %v1657 = vadd.f32 %v1294, %v1656
    %1658 = vdwg.mxu0
    %1659 = vmatpush.msra.mxu0 0.0
    %1660 = vmatpush.msra.mxu0 0.0
    %1661 = vmatpush.msra.mxu0 0.0
    %1662 = vmatpush.msra.mxu0 0.0
    %1663 = vmatpush.msra.mxu0 0.0
    %1664 = vmatpush.msra.mxu0 0.0
    %1665 = vmatpush.msra.mxu0 0.0
    %1666 = vmatpush.msra.mxu0 0.0
    %1667 = vmatpush.msra.mxu0 0.0
    %1668 = vmatpush.msra.mxu0 0.0
    %1669 = vmatpush.msra.mxu0 0.0
    %1670 = vmatpush.msra.mxu0 0.0
    %1671 = vmatpush.msra.mxu0 %v1287
    %1672 = vmatpush.msra.mxu0 %v1267
    %1673 = vmatpush.msra.mxu0 %v1247
    %1674 = vmatpush.msra.mxu0 %v1227
    %1675 = vmatmul.f32.gmra.mxu0 %v1297
    %v1676 = vpop.f32.mrf.mxu0
    %v1677 = vadd.f32 %v1294, %v1676
    %1678 = vdwg.mxu0
    %1679 = vmatpush.msra.mxu0 0.0
    %1680 = vmatpush.msra.mxu0 0.0
    %1681 = vmatpush.msra.mxu0 0.0
    %1682 = vmatpush.msra.mxu0 0.0
    %1683 = vmatpush.msra.mxu0 0.0
    %1684 = vmatpush.msra.mxu0 0.0
    %1685 = vmatpush.msra.mxu0 0.0
    %1686 = vmatpush.msra.mxu0 0.0
    %1687 = vmatpush.msra.mxu0 0.0
    %1688 = vmatpush.msra.mxu0 0.0
    %1689 = vmatpush.msra.mxu0 0.0
    %1690 = vmatpush.msra.mxu0 0.0
    %1691 = vmatpush.msra.mxu0 %v1288
    %1692 = vmatpush.msra.mxu0 %v1268
    %1693 = vmatpush.msra.mxu0 %v1248
    %1694 = vmatpush.msra.mxu0 %v1228
    %1695 = vmatmul.f32.gmra.mxu0 %v1297
    %v1696 = vpop.f32.mrf.mxu0
    %v1697 = vadd.f32 %v1294, %v1696
    %1698 = vdwg.mxu0
    %v1719 = vrot.slane %v1337, 4
    %v1720 = vrot.slane %v1377, 4
    %v1721 = vrot.slane %v1417, 4
    %v1722 = vrot.slane %v1457, 4
    %v1723 = vrot.slane %v1497, 4
    %v1724 = vrot.slane %v1537, 4
    %v1725 = vrot.slane %v1577, 4
    %v1726 = vrot.slane %v1617, 4
    %v1727 = vrot.slane %v1657, 4
    %v1728 = vrot.slane %v1697, 4
    %vm1729 = vcmask 1043456
    %v1730 = vsel %vm1729, %v1317, %v1719
    %v1731 = vsel %vm1729, %v1357, %v1720
    %v1732 = vsel %vm1729, %v1397, %v1721
    %v1733 = vsel %vm1729, %v1437, %v1722
    %v1734 = vsel %vm1729, %v1477, %v1723
    %v1735 = vsel %vm1729, %v1517, %v1724
    %v1736 = vsel %vm1729, %v1557, %v1725
    %v1737 = vsel %vm1729, %v1597, %v1726
    %v1738 = vsel %vm1729, %v1637, %v1727
    %v1739 = vsel %vm1729, %v1677, %v1728
    %1750 = vst [vmem:[#allocation2] sm:$0x77] %v1730
    %1751 = vst [vmem:[#allocation2 + $0x8] sm:$0x77] %v1731
    %1752 = vst [vmem:[#allocation2 + $0x10] sm:$0x77] %v1732
    %1753 = vst [vmem:[#allocation2 + $0x18] sm:$0x77] %v1733
    %1754 = vst [vmem:[#allocation2 + $0x20] sm:$0x77] %v1734
    %1755 = vst [vmem:[#allocation2 + $0x28] sm:$0x77] %v1735
    %1756 = vst [vmem:[#allocation2 + $0x30] sm:$0x77] %v1736
    %1757 = vst [vmem:[#allocation2 + $0x38] sm:$0x77] %v1737
    %1758 = vst [vmem:[#allocation2 + $0x40] sm:$0x77] %v1738
    %1759 = vst [vmem:[#allocation2 + $0x48] sm:$0x77] %v1739
    // Predicated region
    $region30: #{tpu_custom_call.1} parent=1 // pred_check
      _
    $region31: #{tpu_custom_call.1} parent=1 // pred_check_branch
      %1761 = sbr.rel (0) target = $region33
    $region32: #{tpu_custom_call.1} parent=1 // pred_region
      %1763 = vsyncadd [#allocation3], 0
      %s1765 = sshll.u32 [#allocation2], 4
      %s1766 = int_to_ptr.vmem [resolvable:$true] %s1765
      %s1767 = sshll.u32 %s7, 4
      %s1768 = int_to_ptr.hbm [resolvable:$true] %s1767
      %1770 = dma.vmem_to_hbm [thread:$0]  %s1766, 1280, %s1768, [#allocation3]
    $region33: #{tpu_custom_call.1} parent=1 // pred_fallthru
      _
    // Predicated region
    $region34: #{tpu_custom_call.1} parent=1 // pred_check
      _
    $region35: #{tpu_custom_call.1} parent=1 // pred_check_branch
      %1772 = sbr.rel (0) target = $region37
    $region36: #{tpu_custom_call.1} parent=1 // pred_region
      %1774 = dma.done [#allocation3], 1280
    $region37: #{tpu_custom_call.1} parent=1 // pred_fallthru
      _
    %1775 = vsyncpa [#allocation3], 1

</llo_original>
